<compile_context>
chip_gen: v7x
topology: tpu7x:2x2x1
jax: 0.10.0
libtpu: 0.0.40
codegen_flags: <defaults>
</compile_context>

<pallas_src>
import jax
import jax.numpy as jnp
from jax import lax
from jax.experimental import pallas as pl
from jax.experimental.pallas import tpu as pltpu

# ---------------- small ChatGLM-like config ----------------
HIDDEN    = 32                         # config.hidden_size
NUM_HEADS = 4                          # config.num_attention_heads
NUM_KV    = 2                          # config.multi_query_group_num
HEAD_DIM  = HIDDEN // NUM_HEADS        # 8
GROUP     = NUM_HEADS // NUM_KV        # query heads per KV head
Q_SIZE    = NUM_HEADS * HEAD_DIM       # 32
KV_SIZE   = NUM_KV * HEAD_DIM          # 16
FFN       = 64                         # config.ffn_hidden_size
ROT_DIM   = HEAD_DIM // 2              # partial rotary (rotary_dim = head_dim // 2)
SCALING   = HEAD_DIM ** -0.5
EPS       = 1e-5                       # config.layernorm_epsilon
T         = 16                         # total tokens in the sequence
T_TILE    = 8                          # token tile per grid step
assert T % T_TILE == 0 and (T_TILE & (T_TILE - 1)) == 0

# extended QKV output layout (RoPE pair-swap columns folded into the weight):
#   [0:32)=q  [32:48)=k  [48:64)=v  [64:96)=swap(q)  [96:112)=swap(k)
SWQ0    = Q_SIZE + 2 * KV_SIZE         # 64
SWK0    = SWQ0 + Q_SIZE                # 96
QKV_EXT = SWK0 + KV_SIZE               # 112  (still a single 128-lane MXU tile)


# ---------------- fused Pallas kernel ----------------
def glm_block_kernel(x_ref, xf_ref, ln1_w_ref, ln2_w_ref,
                     w_qkv_ref, b_qkv_ref, w_dense_ref, w_h4h_ref, w_4h_ref,
                     cos_q_ref, sin_q_ref, cos_k_ref, sin_k_ref,
                     out_ref):
    qi = pl.program_id(0)
    ln1_w = ln1_w_ref[...]

    # ---- input RMSNorm + extended QKV projection for this query tile ----
    x = x_ref[...]                                            # (T_TILE, H)
    ln1 = x * lax.rsqrt(jnp.mean(x * x, axis=-1, keepdims=True) + EPS) * ln1_w
    qkv_t = jnp.dot(ln1, w_qkv_ref[...],
                    preferred_element_type=jnp.float32) + b_qkv_ref[...]
    # interleaved (GPT-J style, is_neox_style=False) partial RoPE; the pair
    # swap comes out of the projection for free, sign is folded into sin.
    q = (qkv_t[:, :Q_SIZE] * cos_q_ref[...]
         + qkv_t[:, SWQ0:SWQ0 + Q_SIZE] * sin_q_ref[...])     # (T_TILE, Q_SIZE)

    # ---- K/V over the whole (small) sequence: causal prefill, no KV cache ----
    xf = xf_ref[...]                                          # (T, H)
    ln1f = xf * lax.rsqrt(jnp.mean(xf * xf, axis=-1, keepdims=True) + EPS) * ln1_w
    kv_t = jnp.dot(ln1f, w_qkv_ref[...],
                   preferred_element_type=jnp.float32) + b_qkv_ref[...]
    k = (kv_t[:, Q_SIZE:Q_SIZE + KV_SIZE] * cos_k_ref[...]
         + kv_t[:, SWK0:SWK0 + KV_SIZE] * sin_k_ref[...])     # (T, KV_SIZE)
    v = kv_t[:, Q_SIZE + KV_SIZE:Q_SIZE + 2 * KV_SIZE]        # (T, KV_SIZE)

    # ---- causal GQA attention: one score/PV matmul + one softmax per KV group ----
    wd = w_dense_ref[...]                                     # (Q_SIZE, H)
    row = lax.broadcasted_iota(jnp.int32, (GROUP * T_TILE, T), 0)
    col = lax.broadcasted_iota(jnp.int32, (GROUP * T_TILE, T), 1)
    q_tok = qi * T_TILE + jnp.bitwise_and(row, T_TILE - 1)    # token of stacked row
    causal = q_tok >= col

    attn_out = None
    for g in range(NUM_KV):                                   # static loop, 2 groups
        kg = k[:, g * HEAD_DIM:(g + 1) * HEAD_DIM]            # (T, D)
        vg = v[:, g * HEAD_DIM:(g + 1) * HEAD_DIM]            # (T, D)
        # stack the GROUP query heads of this KV group along sublanes (aligned)
        qg = jnp.concatenate(
            [q[:, (g * GROUP + hl) * HEAD_DIM:(g * GROUP + hl + 1) * HEAD_DIM]
             for hl in range(GROUP)], axis=0)                 # (GROUP*T_TILE, D)
        s = jnp.dot(qg, kg.T, preferred_element_type=jnp.float32) * SCALING
        s = jnp.where(causal, s, -1e30)
        s = s - jnp.max(s, axis=-1, keepdims=True)
        p = jnp.exp(s)
        p = p * pl.reciprocal(jnp.sum(p, axis=-1, keepdims=True), approx=True)
        ctx = jnp.dot(p, vg, preferred_element_type=jnp.float32)  # (GROUP*T_TILE, D)
        # fold the context straight into the dense projection (no VMEM scratch)
        for hl in range(GROUP):
            h = g * GROUP + hl
            part = jnp.dot(ctx[hl * T_TILE:(hl + 1) * T_TILE, :],
                           wd[h * HEAD_DIM:(h + 1) * HEAD_DIM, :],
                           preferred_element_type=jnp.float32)
            attn_out = part if attn_out is None else attn_out + part

    # ---- residual 1 (apply_residual_connection_post_layernorm = False) ----
    ln_in = x + attn_out

    # ---- post-attention RMSNorm ----
    ln2 = (ln_in * lax.rsqrt(jnp.mean(ln_in * ln_in, axis=-1, keepdims=True) + EPS)
           * ln2_w_ref[...])

    # ---- MLP: merged gate/up projection, SiluAndMul, down projection ----
    gu = jnp.dot(ln2, w_h4h_ref[...], preferred_element_type=jnp.float32)
    gate, up = gu[:, :FFN], gu[:, FFN:]
    act = gate * jax.nn.sigmoid(gate) * up
    out_ref[...] = jnp.dot(act, w_4h_ref[...],
                           preferred_element_type=jnp.float32) + ln_in


def glm_block(x, params, rope):
    ln1_w, ln2_w, w_qkv_ext, b_qkv_ext, w_dense, w_h4h, w_4h = params
    cos_q, sin_q, cos_k, sin_k = rope
    n_tiles = T // T_TILE

    def tiled(shape):                      # per-token-tile blocks
        return pl.BlockSpec(shape, lambda i: (i, 0))

    def const(shape):                      # VMEM-resident across grid steps
        return pl.BlockSpec(shape, lambda i: (0, 0))

    return pl.pallas_call(
        glm_block_kernel,
        out_shape=jax.ShapeDtypeStruct((T, HIDDEN), jnp.float32),
        grid=(n_tiles,),
        in_specs=[
            tiled((T_TILE, HIDDEN)),       # x  (query tile / residual)
            const((T, HIDDEN)),            # x  (full sequence, for K/V)
            const((1, HIDDEN)),            # ln1_w
            const((1, HIDDEN)),            # ln2_w
            const((HIDDEN, QKV_EXT)),      # w_qkv (+ folded RoPE swap columns)
            const((1, QKV_EXT)),           # b_qkv (+ folded RoPE swap columns)
            const((Q_SIZE, HIDDEN)),       # w_dense
            const((HIDDEN, 2 * FFN)),      # w_h4h
            const((FFN, HIDDEN)),          # w_4h
            tiled((T_TILE, Q_SIZE)),       # cos_q
            tiled((T_TILE, Q_SIZE)),       # sin_q
            const((T, KV_SIZE)),           # cos_k
            const((T, KV_SIZE)),           # sin_k
        ],
        out_specs=tiled((T_TILE, HIDDEN)),
        compiler_params=pltpu.CompilerParams(
            dimension_semantics=("parallel",)),
    )(x, x, ln1_w, ln2_w, w_qkv_ext, b_qkv_ext, w_dense, w_h4h, w_4h,
      cos_q, sin_q, cos_k, sin_k)


# ---------------- RoPE tables & weight prep (one-time, plain JAX) ----------------
def pair_swap_perms():
    # per-head pair-swap permutation (identity on pass-through dims)
    p_head = jnp.eye(HEAD_DIM, dtype=jnp.float32)
    for i in range(ROT_DIM // 2):
        p_head = p_head.at[2 * i, 2 * i].set(0.0).at[2 * i + 1, 2 * i + 1].set(0.0)
        p_head = p_head.at[2 * i + 1, 2 * i].set(1.0).at[2 * i, 2 * i + 1].set(1.0)
    pq = jnp.kron(jnp.eye(NUM_HEADS, dtype=jnp.float32), p_head)   # (Q_SIZE, Q_SIZE)
    pk = jnp.kron(jnp.eye(NUM_KV, dtype=jnp.float32), p_head)      # (KV_SIZE, KV_SIZE)
    return pq, pk


def build_rope_tables(position_ids):
    base = 10000.0                       # 10000 * rope_ratio, rope_ratio = 1.0
    half = ROT_DIM // 2
    inv_freq = 1.0 / (base ** (jnp.arange(0, half, dtype=jnp.float32) * 2.0 / ROT_DIM))
    ang = position_ids.astype(jnp.float32)[:, None] * inv_freq[None, :]   # (T, half)
    cos = jnp.cos(ang)
    sin = jnp.sin(ang)
    # interleaved tables per head; pass-through dims get cos=1, sin=0;
    # the sign of the swapped term is folded into sin.
    cos_head = jnp.ones((T, HEAD_DIM), jnp.float32)
    sin_head = jnp.zeros((T, HEAD_DIM), jnp.float32)
    for i in range(half):
        cos_head = cos_head.at[:, 2 * i].set(cos[:, i]).at[:, 2 * i + 1].set(cos[:, i])
        sin_head = sin_head.at[:, 2 * i].set(-sin[:, i]).at[:, 2 * i + 1].set(sin[:, i])
    cos_q = jnp.tile(cos_head, (1, NUM_HEADS))
    sin_q = jnp.tile(sin_head, (1, NUM_HEADS))
    cos_k = jnp.tile(cos_head, (1, NUM_KV))
    sin_k = jnp.tile(sin_head, (1, NUM_KV))
    return cos_q, sin_q, cos_k, sin_k


def extend_qkv_weight(w_qkv, b_qkv):
    """One-time weight prep: append columns that produce the RoPE pair-swapped
    q / k directly out of the QKV matmul (pure column permutation of W/b)."""
    pq, pk = pair_swap_perms()
    w_ext = jnp.concatenate(
        [w_qkv, w_qkv[:, :Q_SIZE] @ pq, w_qkv[:, Q_SIZE:Q_SIZE + KV_SIZE] @ pk], axis=1)
    b_ext = jnp.concatenate(
        [b_qkv, b_qkv[:, :Q_SIZE] @ pq, b_qkv[:, Q_SIZE:Q_SIZE + KV_SIZE] @ pk], axis=1)
    return w_ext, b_ext


# ---------------- pure-JAX reference (original weights, no Pallas) ----------------
def reference(x, raw_params, rope):
    ln1_w, ln2_w, w_qkv, b_qkv, w_dense, w_h4h, w_4h = raw_params
    cos_q, sin_q, cos_k, sin_k = rope
    pq, pk = pair_swap_perms()

    def rms(h, w):
        return h * lax.rsqrt(jnp.mean(h * h, axis=-1, keepdims=True) + EPS) * w

    ln1 = rms(x, ln1_w)
    qkv = ln1 @ w_qkv + b_qkv
    q, k, v = (qkv[:, :Q_SIZE], qkv[:, Q_SIZE:Q_SIZE + KV_SIZE],
               qkv[:, Q_SIZE + KV_SIZE:])
    q = q * cos_q + (q @ pq) * sin_q
    k = k * cos_k + (k @ pk) * sin_k
    causal = jnp.tril(jnp.ones((T, T), bool))
    ctx = []
    for h in range(NUM_HEADS):
        g = h // GROUP
        qh = q[:, h * HEAD_DIM:(h + 1) * HEAD_DIM]
        kh = k[:, g * HEAD_DIM:(g + 1) * HEAD_DIM]
        vh = v[:, g * HEAD_DIM:(g + 1) * HEAD_DIM]
        s = jnp.where(causal, qh @ kh.T * SCALING, -1e30)
        p = jax.nn.softmax(s, axis=-1)
        ctx.append(p @ vh)
    attn_out = jnp.concatenate(ctx, axis=-1) @ w_dense
    ln_input = x + attn_out
    ln2 = rms(ln_input, ln2_w)
    gu = ln2 @ w_h4h
    act = jax.nn.silu(gu[:, :FFN]) * gu[:, FFN:]
    return act @ w_4h + ln_input


if __name__ == "__main__":
    key = jax.random.PRNGKey(0)
    ks = jax.random.split(key, 8)

    x = jax.random.normal(ks[0], (T, HIDDEN), jnp.float32)
    position_ids = jnp.arange(T, dtype=jnp.int32)

    # deterministic synthetic parameters (shapes from GLMBlock.__init__;
    # add_bias_linear=False, add_qkv_bias=True)
    ln1_w   = 1.0 + 0.02 * jax.random.normal(ks[1], (1, HIDDEN), jnp.float32)
    ln2_w   = 1.0 + 0.02 * jax.random.normal(ks[2], (1, HIDDEN), jnp.float32)
    w_qkv   = 0.05 * jax.random.normal(ks[3], (HIDDEN, Q_SIZE + 2 * KV_SIZE), jnp.float32)
    b_qkv   = 0.05 * jax.random.normal(ks[4], (1, Q_SIZE + 2 * KV_SIZE), jnp.float32)
    w_dense = 0.05 * jax.random.normal(ks[5], (Q_SIZE, HIDDEN), jnp.float32)
    w_h4h   = 0.05 * jax.random.normal(ks[6], (HIDDEN, 2 * FFN), jnp.float32)
    w_4h    = 0.05 * jax.random.normal(ks[7], (FFN, HIDDEN), jnp.float32)

    w_qkv_ext, b_qkv_ext = extend_qkv_weight(w_qkv, b_qkv)
    params = (ln1_w, ln2_w, w_qkv_ext, b_qkv_ext, w_dense, w_h4h, w_4h)
    rope = build_rope_tables(position_ids)

    out = glm_block(x, params, rope)
    jax.block_until_ready(out)

    ref = reference(x, (ln1_w, ln2_w, w_qkv, b_qkv, w_dense, w_h4h, w_4h), rope)
    assert out.shape == (T, HIDDEN)
    assert jnp.allclose(out, ref, rtol=2e-2, atol=2e-2), "mismatch vs reference"

    # TODO(synk): paged kv_cache / AttentionMetadata (decode path) not modeled;
    # this kernel is the fused causal prefill of a single sequence (K/V are
    # recomputed from the full sequence per query tile instead of cached).
    print("KERNEL_OK")
</pallas_src>

<mosaic_0001>
module attributes {stable_mosaic.version = 11 : i64} {
  func.func @glm_block_kernel(%arg0: i32, %arg1: memref<8x32xf32, #tpu.memory_space<vmem>>, %arg2: memref<16x32xf32, #tpu.memory_space<vmem>>, %arg3: memref<1x32xf32, #tpu.memory_space<vmem>>, %arg4: memref<1x32xf32, #tpu.memory_space<vmem>>, %arg5: memref<32x112xf32, #tpu.memory_space<vmem>>, %arg6: memref<1x112xf32, #tpu.memory_space<vmem>>, %arg7: memref<32x32xf32, #tpu.memory_space<vmem>>, %arg8: memref<32x128xf32, #tpu.memory_space<vmem>>, %arg9: memref<64x32xf32, #tpu.memory_space<vmem>>, %arg10: memref<8x32xf32, #tpu.memory_space<vmem>>, %arg11: memref<8x32xf32, #tpu.memory_space<vmem>>, %arg12: memref<16x16xf32, #tpu.memory_space<vmem>>, %arg13: memref<16x16xf32, #tpu.memory_space<vmem>>, %arg14: memref<8x32xf32, #tpu.memory_space<vmem>>) attributes {dimension_semantics = [#tpu.dimension_semantics<parallel>], iteration_bounds = array<i64: 2>, scalar_prefetch = 0 : i64, scratch_operands = 0 : i64, tpu.core_type = #tpu.core_type<tc>, window_params = [{transform_indices = @transform_0, window_bounds = array<i64: 8, 32>}, {pipeline_mode = #tpu.pipeline_mode<synchronous>, transform_indices = @transform_1, window_bounds = array<i64: 16, 32>}, {pipeline_mode = #tpu.pipeline_mode<synchronous>, transform_indices = @transform_2, window_bounds = array<i64: 1, 32>}, {pipeline_mode = #tpu.pipeline_mode<synchronous>, transform_indices = @transform_3, window_bounds = array<i64: 1, 32>}, {pipeline_mode = #tpu.pipeline_mode<synchronous>, transform_indices = @transform_4, window_bounds = array<i64: 32, 112>}, {pipeline_mode = #tpu.pipeline_mode<synchronous>, transform_indices = @transform_5, window_bounds = array<i64: 1, 112>}, {pipeline_mode = #tpu.pipeline_mode<synchronous>, transform_indices = @transform_6, window_bounds = array<i64: 32, 32>}, {pipeline_mode = #tpu.pipeline_mode<synchronous>, transform_indices = @transform_7, window_bounds = array<i64: 32, 128>}, {pipeline_mode = #tpu.pipeline_mode<synchronous>, transform_indices = @transform_8, window_bounds = array<i64: 64, 32>}, {transform_indices = @transform_9, window_bounds = array<i64: 8, 32>}, {transform_indices = @transform_10, window_bounds = array<i64: 8, 32>}, {pipeline_mode = #tpu.pipeline_mode<synchronous>, transform_indices = @transform_11, window_bounds = array<i64: 16, 16>}, {pipeline_mode = #tpu.pipeline_mode<synchronous>, transform_indices = @transform_12, window_bounds = array<i64: 16, 16>}, {transform_indices = @transform_13, window_bounds = array<i64: 8, 32>}]} {
    %c0 = arith.constant 0 : index
    %c0_0 = arith.constant 0 : index
    %0 = vector.load %arg3[%c0, %c0_0] : memref<1x32xf32, #tpu.memory_space<vmem>>, vector<1x32xf32>
    %c0_1 = arith.constant 0 : index
    %c0_2 = arith.constant 0 : index
    %1 = vector.load %arg1[%c0_1, %c0_2] : memref<8x32xf32, #tpu.memory_space<vmem>>, vector<8x32xf32>
    %2 = arith.mulf %1, %1 : vector<8x32xf32>
    %cst = arith.constant dense<0.000000e+00> : vector<8xf32>
    %3 = vector.multi_reduction <add>, %2, %cst [1] : vector<8x32xf32> to vector<8xf32>
    %4 = vector.shape_cast %3 : vector<8xf32> to vector<8x1xf32>
    %cst_3 = arith.constant 3.200000e+01 : f32
    %5 = vector.broadcast %cst_3 : f32 to vector<8x1xf32>
    %6 = arith.divf %4, %5 : vector<8x1xf32>
    %cst_4 = arith.constant 9.99999974E-6 : f32
    %7 = vector.broadcast %cst_4 : f32 to vector<8x1xf32>
    %8 = arith.addf %6, %7 : vector<8x1xf32>
    %9 = math.rsqrt %8 : vector<8x1xf32>
    %10 = vector.broadcast %9 : vector<8x1xf32> to vector<8x32xf32>
    %11 = arith.mulf %1, %10 : vector<8x32xf32>
    %12 = vector.broadcast %0 : vector<1x32xf32> to vector<8x32xf32>
    %13 = arith.mulf %11, %12 : vector<8x32xf32>
    %c0_5 = arith.constant 0 : index
    %c0_6 = arith.constant 0 : index
    %14 = vector.load %arg5[%c0_5, %c0_6] : memref<32x112xf32, #tpu.memory_space<vmem>>, vector<32x112xf32>
    %cst_7 = arith.constant dense<0.000000e+00> : vector<8x112xf32>
    %15 = tpu.matmul %13, %14, %cst_7 {dimension_numbers = #tpu.dot_dimension_numbers<[1], [0], [0], [1], [0, 0, 1, 1], [], []>} : vector<8x32xf32>, vector<32x112xf32>, vector<8x112xf32> -> vector<8x112xf32>
    %c0_8 = arith.constant 0 : index
    %c0_9 = arith.constant 0 : index
    %16 = vector.load %arg6[%c0_8, %c0_9] : memref<1x112xf32, #tpu.memory_space<vmem>>, vector<1x112xf32>
    %17 = vector.broadcast %16 : vector<1x112xf32> to vector<8x112xf32>
    %18 = arith.addf %15, %17 : vector<8x112xf32>
    %19 = vector.extract_strided_slice %18 {offsets = [0, 0], sizes = [8, 32], strides = [1, 1]} : vector<8x112xf32> to vector<8x32xf32>
    %c0_10 = arith.constant 0 : index
    %c0_11 = arith.constant 0 : index
    %20 = vector.load %arg10[%c0_10, %c0_11] : memref<8x32xf32, #tpu.memory_space<vmem>>, vector<8x32xf32>
    %21 = arith.mulf %19, %20 : vector<8x32xf32>
    %22 = vector.extract_strided_slice %18 {offsets = [0, 64], sizes = [8, 32], strides = [1, 1]} : vector<8x112xf32> to vector<8x32xf32>
    %c0_12 = arith.constant 0 : index
    %c0_13 = arith.constant 0 : index
    %23 = vector.load %arg11[%c0_12, %c0_13] : memref<8x32xf32, #tpu.memory_space<vmem>>, vector<8x32xf32>
    %24 = arith.mulf %22, %23 : vector<8x32xf32>
    %25 = arith.addf %21, %24 : vector<8x32xf32>
    %c0_14 = arith.constant 0 : index
    %c0_15 = arith.constant 0 : index
    %26 = vector.load %arg2[%c0_14, %c0_15] : memref<16x32xf32, #tpu.memory_space<vmem>>, vector<16x32xf32>
    %27 = arith.mulf %26, %26 : vector<16x32xf32>
    %cst_16 = arith.constant dense<0.000000e+00> : vector<16xf32>
    %28 = vector.multi_reduction <add>, %27, %cst_16 [1] : vector<16x32xf32> to vector<16xf32>
    %29 = vector.shape_cast %28 : vector<16xf32> to vector<16x1xf32>
    %cst_17 = arith.constant 3.200000e+01 : f32
    %30 = vector.broadcast %cst_17 : f32 to vector<16x1xf32>
    %31 = arith.divf %29, %30 : vector<16x1xf32>
    %cst_18 = arith.constant 9.99999974E-6 : f32
    %32 = vector.broadcast %cst_18 : f32 to vector<16x1xf32>
    %33 = arith.addf %31, %32 : vector<16x1xf32>
    %34 = math.rsqrt %33 : vector<16x1xf32>
    %35 = vector.broadcast %34 : vector<16x1xf32> to vector<16x32xf32>
    %36 = arith.mulf %26, %35 : vector<16x32xf32>
    %37 = vector.broadcast %0 : vector<1x32xf32> to vector<16x32xf32>
    %38 = arith.mulf %36, %37 : vector<16x32xf32>
    %c0_19 = arith.constant 0 : index
    %c0_20 = arith.constant 0 : index
    %39 = vector.load %arg5[%c0_19, %c0_20] : memref<32x112xf32, #tpu.memory_space<vmem>>, vector<32x112xf32>
    %cst_21 = arith.constant dense<0.000000e+00> : vector<16x112xf32>
    %40 = tpu.matmul %38, %39, %cst_21 {dimension_numbers = #tpu.dot_dimension_numbers<[1], [0], [0], [1], [0, 0, 1, 1], [], []>} : vector<16x32xf32>, vector<32x112xf32>, vector<16x112xf32> -> vector<16x112xf32>
    %c0_22 = arith.constant 0 : index
    %c0_23 = arith.constant 0 : index
    %41 = vector.load %arg6[%c0_22, %c0_23] : memref<1x112xf32, #tpu.memory_space<vmem>>, vector<1x112xf32>
    %42 = vector.broadcast %41 : vector<1x112xf32> to vector<16x112xf32>
    %43 = arith.addf %40, %42 : vector<16x112xf32>
    %44 = vector.extract_strided_slice %43 {offsets = [0, 32], sizes = [16, 16], strides = [1, 1]} : vector<16x112xf32> to vector<16x16xf32>
    %c0_24 = arith.constant 0 : index
    %c0_25 = arith.constant 0 : index
    %45 = vector.load %arg12[%c0_24, %c0_25] : memref<16x16xf32, #tpu.memory_space<vmem>>, vector<16x16xf32>
    %46 = arith.mulf %44, %45 : vector<16x16xf32>
    %47 = vector.extract_strided_slice %43 {offsets = [0, 96], sizes = [16, 16], strides = [1, 1]} : vector<16x112xf32> to vector<16x16xf32>
    %c0_26 = arith.constant 0 : index
    %c0_27 = arith.constant 0 : index
    %48 = vector.load %arg13[%c0_26, %c0_27] : memref<16x16xf32, #tpu.memory_space<vmem>>, vector<16x16xf32>
    %49 = arith.mulf %47, %48 : vector<16x16xf32>
    %50 = arith.addf %46, %49 : vector<16x16xf32>
    %51 = vector.extract_strided_slice %43 {offsets = [0, 48], sizes = [16, 16], strides = [1, 1]} : vector<16x112xf32> to vector<16x16xf32>
    %c0_28 = arith.constant 0 : index
    %c0_29 = arith.constant 0 : index
    %52 = vector.load %arg7[%c0_28, %c0_29] : memref<32x32xf32, #tpu.memory_space<vmem>>, vector<32x32xf32>
    %53 = tpu.iota {dimensions = array<i32: 0>} : vector<16x16xi32>
    %54 = tpu.iota {dimensions = array<i32: 1>} : vector<16x16xi32>
    %c8_i32 = arith.constant 8 : i32
    %55 = arith.muli %arg0, %c8_i32 : i32
    %c7_i32 = arith.constant 7 : i32
    %56 = vector.broadcast %c7_i32 : i32 to vector<16x16xi32>
    %57 = arith.andi %53, %56 : vector<16x16xi32>
    %58 = vector.broadcast %55 : i32 to vector<16x16xi32>
    %59 = arith.addi %58, %57 : vector<16x16xi32>
    %60 = arith.cmpi sge, %59, %54 : vector<16x16xi32>
    %61 = vector.extract_strided_slice %50 {offsets = [0, 0], sizes = [16, 8], strides = [1, 1]} : vector<16x16xf32> to vector<16x8xf32>
    %62 = vector.extract_strided_slice %51 {offsets = [0, 0], sizes = [16, 8], strides = [1, 1]} : vector<16x16xf32> to vector<16x8xf32>
    %63 = vector.extract_strided_slice %25 {offsets = [0, 0], sizes = [8, 8], strides = [1, 1]} : vector<8x32xf32> to vector<8x8xf32>
    %64 = vector.extract_strided_slice %25 {offsets = [0, 8], sizes = [8, 8], strides = [1, 1]} : vector<8x32xf32> to vector<8x8xf32>
    %65 = tpu.concatenate %63, %64 in 0 : vector<8x8xf32>, vector<8x8xf32> -> vector<16x8xf32>
    %66 = tpu.transpose %61, [1, 0] : vector<16x8xf32> -> vector<8x16xf32>
    %cst_30 = arith.constant dense<0.000000e+00> : vector<16x16xf32>
    %67 = tpu.matmul %65, %66, %cst_30 {dimension_numbers = #tpu.dot_dimension_numbers<[1], [0], [0], [1], [0, 0, 1, 1], [], []>} : vector<16x8xf32>, vector<8x16xf32>, vector<16x16xf32> -> vector<16x16xf32>
    %cst_31 = arith.constant 0.353553385 : f32
    %68 = vector.broadcast %cst_31 : f32 to vector<16x16xf32>
    %69 = arith.mulf %67, %68 : vector<16x16xf32>
    %cst_32 = arith.constant -1.000000e+30 : f32
    %70 = vector.broadcast %cst_32 : f32 to vector<16x16xf32>
    %71 = arith.select %60, %69, %70 : vector<16x16xi1>, vector<16x16xf32>
    %cst_33 = arith.constant dense<0xFF800000> : vector<16xf32>
    %72 = vector.multi_reduction <maximumf>, %71, %cst_33 [1] : vector<16x16xf32> to vector<16xf32>
    %73 = vector.shape_cast %72 : vector<16xf32> to vector<16x1xf32>
    %74 = vector.broadcast %73 : vector<16x1xf32> to vector<16x16xf32>
    %75 = arith.subf %71, %74 : vector<16x16xf32>
    %76 = math.exp %75 : vector<16x16xf32>
    %cst_34 = arith.constant dense<0.000000e+00> : vector<16xf32>
    %77 = vector.multi_reduction <add>, %76, %cst_34 [1] : vector<16x16xf32> to vector<16xf32>
    %78 = vector.shape_cast %77 : vector<16xf32> to vector<16x1xf32>
    %79 = tpu.reciprocal %78 {approx = true} : vector<16x1xf32> -> vector<16x1xf32>
    %80 = vector.broadcast %79 : vector<16x1xf32> to vector<16x16xf32>
    %81 = arith.mulf %76, %80 : vector<16x16xf32>
    %cst_35 = arith.constant dense<0.000000e+00> : vector<16x8xf32>
    %82 = tpu.matmul %81, %62, %cst_35 {dimension_numbers = #tpu.dot_dimension_numbers<[1], [0], [0], [1], [0, 0, 1, 1], [], []>} : vector<16x16xf32>, vector<16x8xf32>, vector<16x8xf32> -> vector<16x8xf32>
    %83 = vector.extract_strided_slice %82 {offsets = [0, 0], sizes = [8, 8], strides = [1, 1]} : vector<16x8xf32> to vector<8x8xf32>
    %84 = vector.extract_strided_slice %52 {offsets = [0, 0], sizes = [8, 32], strides = [1, 1]} : vector<32x32xf32> to vector<8x32xf32>
    %cst_36 = arith.constant dense<0.000000e+00> : vector<8x32xf32>
    %85 = tpu.matmul %83, %84, %cst_36 {dimension_numbers = #tpu.dot_dimension_numbers<[1], [0], [0], [1], [0, 0, 1, 1], [], []>} : vector<8x8xf32>, vector<8x32xf32>, vector<8x32xf32> -> vector<8x32xf32>
    %86 = vector.extract_strided_slice %82 {offsets = [8, 0], sizes = [8, 8], strides = [1, 1]} : vector<16x8xf32> to vector<8x8xf32>
    %87 = vector.extract_strided_slice %52 {offsets = [8, 0], sizes = [8, 32], strides = [1, 1]} : vector<32x32xf32> to vector<8x32xf32>
    %cst_37 = arith.constant dense<0.000000e+00> : vector<8x32xf32>
    %88 = tpu.matmul %86, %87, %cst_37 {dimension_numbers = #tpu.dot_dimension_numbers<[1], [0], [0], [1], [0, 0, 1, 1], [], []>} : vector<8x8xf32>, vector<8x32xf32>, vector<8x32xf32> -> vector<8x32xf32>
    %89 = arith.addf %85, %88 : vector<8x32xf32>
    %90 = vector.extract_strided_slice %50 {offsets = [0, 8], sizes = [16, 8], strides = [1, 1]} : vector<16x16xf32> to vector<16x8xf32>
    %91 = vector.extract_strided_slice %51 {offsets = [0, 8], sizes = [16, 8], strides = [1, 1]} : vector<16x16xf32> to vector<16x8xf32>
    %92 = vector.extract_strided_slice %25 {offsets = [0, 16], sizes = [8, 8], strides = [1, 1]} : vector<8x32xf32> to vector<8x8xf32>
    %93 = vector.extract_strided_slice %25 {offsets = [0, 24], sizes = [8, 8], strides = [1, 1]} : vector<8x32xf32> to vector<8x8xf32>
    %94 = tpu.concatenate %92, %93 in 0 : vector<8x8xf32>, vector<8x8xf32> -> vector<16x8xf32>
    %95 = tpu.transpose %90, [1, 0] : vector<16x8xf32> -> vector<8x16xf32>
    %cst_38 = arith.constant dense<0.000000e+00> : vector<16x16xf32>
    %96 = tpu.matmul %94, %95, %cst_38 {dimension_numbers = #tpu.dot_dimension_numbers<[1], [0], [0], [1], [0, 0, 1, 1], [], []>} : vector<16x8xf32>, vector<8x16xf32>, vector<16x16xf32> -> vector<16x16xf32>
    %cst_39 = arith.constant 0.353553385 : f32
    %97 = vector.broadcast %cst_39 : f32 to vector<16x16xf32>
    %98 = arith.mulf %96, %97 : vector<16x16xf32>
    %cst_40 = arith.constant -1.000000e+30 : f32
    %99 = vector.broadcast %cst_40 : f32 to vector<16x16xf32>
    %100 = arith.select %60, %98, %99 : vector<16x16xi1>, vector<16x16xf32>
    %cst_41 = arith.constant dense<0xFF800000> : vector<16xf32>
    %101 = vector.multi_reduction <maximumf>, %100, %cst_41 [1] : vector<16x16xf32> to vector<16xf32>
    %102 = vector.shape_cast %101 : vector<16xf32> to vector<16x1xf32>
    %103 = vector.broadcast %102 : vector<16x1xf32> to vector<16x16xf32>
    %104 = arith.subf %100, %103 : vector<16x16xf32>
    %105 = math.exp %104 : vector<16x16xf32>
    %cst_42 = arith.constant dense<0.000000e+00> : vector<16xf32>
    %106 = vector.multi_reduction <add>, %105, %cst_42 [1] : vector<16x16xf32> to vector<16xf32>
    %107 = vector.shape_cast %106 : vector<16xf32> to vector<16x1xf32>
    %108 = tpu.reciprocal %107 {approx = true} : vector<16x1xf32> -> vector<16x1xf32>
    %109 = vector.broadcast %108 : vector<16x1xf32> to vector<16x16xf32>
    %110 = arith.mulf %105, %109 : vector<16x16xf32>
    %cst_43 = arith.constant dense<0.000000e+00> : vector<16x8xf32>
    %111 = tpu.matmul %110, %91, %cst_43 {dimension_numbers = #tpu.dot_dimension_numbers<[1], [0], [0], [1], [0, 0, 1, 1], [], []>} : vector<16x16xf32>, vector<16x8xf32>, vector<16x8xf32> -> vector<16x8xf32>
    %112 = vector.extract_strided_slice %111 {offsets = [0, 0], sizes = [8, 8], strides = [1, 1]} : vector<16x8xf32> to vector<8x8xf32>
    %113 = vector.extract_strided_slice %52 {offsets = [16, 0], sizes = [8, 32], strides = [1, 1]} : vector<32x32xf32> to vector<8x32xf32>
    %cst_44 = arith.constant dense<0.000000e+00> : vector<8x32xf32>
    %114 = tpu.matmul %112, %113, %cst_44 {dimension_numbers = #tpu.dot_dimension_numbers<[1], [0], [0], [1], [0, 0, 1, 1], [], []>} : vector<8x8xf32>, vector<8x32xf32>, vector<8x32xf32> -> vector<8x32xf32>
    %115 = arith.addf %89, %114 : vector<8x32xf32>
    %116 = vector.extract_strided_slice %111 {offsets = [8, 0], sizes = [8, 8], strides = [1, 1]} : vector<16x8xf32> to vector<8x8xf32>
    %117 = vector.extract_strided_slice %52 {offsets = [24, 0], sizes = [8, 32], strides = [1, 1]} : vector<32x32xf32> to vector<8x32xf32>
    %cst_45 = arith.constant dense<0.000000e+00> : vector<8x32xf32>
    %118 = tpu.matmul %116, %117, %cst_45 {dimension_numbers = #tpu.dot_dimension_numbers<[1], [0], [0], [1], [0, 0, 1, 1], [], []>} : vector<8x8xf32>, vector<8x32xf32>, vector<8x32xf32> -> vector<8x32xf32>
    %119 = arith.addf %115, %118 : vector<8x32xf32>
    %120 = arith.addf %1, %119 : vector<8x32xf32>
    %121 = arith.mulf %120, %120 : vector<8x32xf32>
    %cst_46 = arith.constant dense<0.000000e+00> : vector<8xf32>
    %122 = vector.multi_reduction <add>, %121, %cst_46 [1] : vector<8x32xf32> to vector<8xf32>
    %123 = vector.shape_cast %122 : vector<8xf32> to vector<8x1xf32>
    %cst_47 = arith.constant 3.200000e+01 : f32
    %124 = vector.broadcast %cst_47 : f32 to vector<8x1xf32>
    %125 = arith.divf %123, %124 : vector<8x1xf32>
    %cst_48 = arith.constant 9.99999974E-6 : f32
    %126 = vector.broadcast %cst_48 : f32 to vector<8x1xf32>
    %127 = arith.addf %125, %126 : vector<8x1xf32>
    %128 = math.rsqrt %127 : vector<8x1xf32>
    %129 = vector.broadcast %128 : vector<8x1xf32> to vector<8x32xf32>
    %130 = arith.mulf %120, %129 : vector<8x32xf32>
    %c0_49 = arith.constant 0 : index
    %c0_50 = arith.constant 0 : index
    %131 = vector.load %arg4[%c0_49, %c0_50] : memref<1x32xf32, #tpu.memory_space<vmem>>, vector<1x32xf32>
    %132 = vector.broadcast %131 : vector<1x32xf32> to vector<8x32xf32>
    %133 = arith.mulf %130, %132 : vector<8x32xf32>
    %c0_51 = arith.constant 0 : index
    %c0_52 = arith.constant 0 : index
    %134 = vector.load %arg8[%c0_51, %c0_52] : memref<32x128xf32, #tpu.memory_space<vmem>>, vector<32x128xf32>
    %cst_53 = arith.constant dense<0.000000e+00> : vector<8x128xf32>
    %135 = tpu.matmul %133, %134, %cst_53 {dimension_numbers = #tpu.dot_dimension_numbers<[1], [0], [0], [1], [0, 0, 1, 1], [], []>} : vector<8x32xf32>, vector<32x128xf32>, vector<8x128xf32> -> vector<8x128xf32>
    %136 = vector.extract_strided_slice %135 {offsets = [0, 0], sizes = [8, 64], strides = [1, 1]} : vector<8x128xf32> to vector<8x64xf32>
    %137 = vector.extract_strided_slice %135 {offsets = [0, 64], sizes = [8, 64], strides = [1, 1]} : vector<8x128xf32> to vector<8x64xf32>
    %138 = arith.negf %136 : vector<8x64xf32>
    %139 = math.exp %138 : vector<8x64xf32>
    %cst_54 = arith.constant 1.000000e+00 : f32
    %140 = vector.broadcast %cst_54 : f32 to vector<8x64xf32>
    %141 = arith.addf %140, %139 : vector<8x64xf32>
    %142 = arith.divf %140, %141 : vector<8x64xf32>
    %143 = arith.mulf %136, %142 : vector<8x64xf32>
    %144 = arith.mulf %143, %137 : vector<8x64xf32>
    %c0_55 = arith.constant 0 : index
    %c0_56 = arith.constant 0 : index
    %145 = vector.load %arg9[%c0_55, %c0_56] : memref<64x32xf32, #tpu.memory_space<vmem>>, vector<64x32xf32>
    %cst_57 = arith.constant dense<0.000000e+00> : vector<8x32xf32>
    %146 = tpu.matmul %144, %145, %cst_57 {dimension_numbers = #tpu.dot_dimension_numbers<[1], [0], [0], [1], [0, 0, 1, 1], [], []>} : vector<8x64xf32>, vector<64x32xf32>, vector<8x32xf32> -> vector<8x32xf32>
    %147 = arith.addf %146, %120 : vector<8x32xf32>
    %c0_58 = arith.constant 0 : index
    %c0_59 = arith.constant 0 : index
    %148 = vector.load %arg14[%c0_58, %c0_59] : memref<8x32xf32, #tpu.memory_space<vmem>>, vector<8x32xf32>
    tpu.vector_store %arg14[%c0_58, %c0_59], %147 {strides = array<i32>} : memref<8x32xf32, #tpu.memory_space<vmem>>, vector<8x32xf32>,
    return
  }
  func.func @transform_0(%arg0: i32) -> (i32, i32) {
    %c0_i32 = arith.constant 0 : i32
    %c0_i32_0 = arith.constant 0 : i32
    return %arg0, %c0_i32 : i32, i32
  }
  func.func @transform_1(%arg0: i32) -> (i32, i32) {
    %c0_i32 = arith.constant 0 : i32
    %c0_i32_0 = arith.constant 0 : i32
    %c0_i32_1 = arith.constant 0 : i32
    return %c0_i32, %c0_i32_0 : i32, i32
  }
  func.func @transform_2(%arg0: i32) -> (i32, i32) {
    %c0_i32 = arith.constant 0 : i32
    %c0_i32_0 = arith.constant 0 : i32
    %c0_i32_1 = arith.constant 0 : i32
    return %c0_i32, %c0_i32_0 : i32, i32
  }
  func.func @transform_3(%arg0: i32) -> (i32, i32) {
    %c0_i32 = arith.constant 0 : i32
    %c0_i32_0 = arith.constant 0 : i32
    %c0_i32_1 = arith.constant 0 : i32
    return %c0_i32, %c0_i32_0 : i32, i32
  }
  func.func @transform_4(%arg0: i32) -> (i32, i32) {
    %c0_i32 = arith.constant 0 : i32
    %c0_i32_0 = arith.constant 0 : i32
    %c0_i32_1 = arith.constant 0 : i32
    return %c0_i32, %c0_i32_0 : i32, i32
  }
  func.func @transform_5(%arg0: i32) -> (i32, i32) {
    %c0_i32 = arith.constant 0 : i32
    %c0_i32_0 = arith.constant 0 : i32
    %c0_i32_1 = arith.constant 0 : i32
    return %c0_i32, %c0_i32_0 : i32, i32
  }
  func.func @transform_6(%arg0: i32) -> (i32, i32) {
    %c0_i32 = arith.constant 0 : i32
    %c0_i32_0 = arith.constant 0 : i32
    %c0_i32_1 = arith.constant 0 : i32
    return %c0_i32, %c0_i32_0 : i32, i32
  }
  func.func @transform_7(%arg0: i32) -> (i32, i32) {
    %c0_i32 = arith.constant 0 : i32
    %c0_i32_0 = arith.constant 0 : i32
    %c0_i32_1 = arith.constant 0 : i32
    return %c0_i32, %c0_i32_0 : i32, i32
  }
  func.func @transform_8(%arg0: i32) -> (i32, i32) {
    %c0_i32 = arith.constant 0 : i32
    %c0_i32_0 = arith.constant 0 : i32
    %c0_i32_1 = arith.constant 0 : i32
    return %c0_i32, %c0_i32_0 : i32, i32
  }
  func.func @transform_9(%arg0: i32) -> (i32, i32) {
    %c0_i32 = arith.constant 0 : i32
    %c0_i32_0 = arith.constant 0 : i32
    return %arg0, %c0_i32 : i32, i32
  }
  func.func @transform_10(%arg0: i32) -> (i32, i32) {
    %c0_i32 = arith.constant 0 : i32
    %c0_i32_0 = arith.constant 0 : i32
    return %arg0, %c0_i32 : i32, i32
  }
  func.func @transform_11(%arg0: i32) -> (i32, i32) {
    %c0_i32 = arith.constant 0 : i32
    %c0_i32_0 = arith.constant 0 : i32
    %c0_i32_1 = arith.constant 0 : i32
    return %c0_i32, %c0_i32_0 : i32, i32
  }
  func.func @transform_12(%arg0: i32) -> (i32, i32) {
    %c0_i32 = arith.constant 0 : i32
    %c0_i32_0 = arith.constant 0 : i32
    %c0_i32_1 = arith.constant 0 : i32
    return %c0_i32, %c0_i32_0 : i32, i32
  }
  func.func @transform_13(%arg0: i32) -> (i32, i32) {
    %c0_i32 = arith.constant 0 : i32
    %c0_i32_0 = arith.constant 0 : i32
    return %arg0, %c0_i32 : i32, i32
  }
}

</mosaic_0001>

<llo_original>
// kernel: tpu_custom_call.1
$region0: #{tpu_custom_call.1}
  #allocation0 [shape = 'u32[]', space=smem, size = 0x4, offset = 0x4, fixed_abs, tag = 'smem constant byte address 0x4 - core index']
  #allocation1 [shape = 'u32[144,128]{1,0:T(1,128)}', space=vmem, size = 0x12000, scoped, tag = 'internal scratch']
  %s0 = inlined_call_operand.hbm [shape: f32[16,32], index: 0, kind: input, shape index: {}]
  %s1 = inlined_call_operand.hbm [shape: f32[16,32], index: 1, kind: input, shape index: {}]
  %s2 = inlined_call_operand.vmem [shape: f32[1,32], index: 2, kind: input, shape index: {}]
  %s3 = inlined_call_operand.vmem [shape: f32[1,32], index: 3, kind: input, shape index: {}]
  %s4 = inlined_call_operand.vmem [shape: f32[32,112], index: 4, kind: input, shape index: {}]
  %s5 = inlined_call_operand.hbm [shape: f32[1,112], index: 5, kind: input, shape index: {}]
  %s6 = inlined_call_operand.vmem [shape: f32[32,32], index: 6, kind: input, shape index: {}]
  %s7 = inlined_call_operand.vmem [shape: f32[32,128], index: 7, kind: input, shape index: {}]
  %s8 = inlined_call_operand.vmem [shape: f32[64,32], index: 8, kind: input, shape index: {}]
  %s9 = inlined_call_operand.vmem [shape: f32[16,32], index: 9, kind: input, shape index: {}]
  %s10 = inlined_call_operand.vmem [shape: f32[16,32], index: 10, kind: input, shape index: {}]
  %s11 = inlined_call_operand.hbm [shape: f32[16,16], index: 11, kind: input, shape index: {}]
  %s12 = inlined_call_operand.hbm [shape: f32[16,16], index: 12, kind: input, shape index: {}]
  %s13 = inlined_call_operand.hbm [shape: f32[16,32], index: 13, kind: output, shape index: {}]
  %s14 = sld [smem:[#allocation0]]
  $region105: #{tpu_custom_call.1} parent=0
    _
  %s16 = ssub.s32 1, %s14
  %s17 = scalar_select 0, %s16, %s14
  $region1: #{tpu_custom_call.1} parent=0
    #allocation2 [shape = 'u8[8192]{0}', space=vmem, size = 0x2000, scoped, tag = 'input window, operand 0']
    #allocation3 [shape = 's32[2]{0}', space=sflag, size = 0x8, scoped, tag = 'scoped memory for tpu_custom_call.1']
    #allocation4 [shape = 's32[2]{0}', space=sflag, size = 0x8, scoped, tag = 'scoped memory for tpu_custom_call.1']
    #allocation5 [shape = 'u8[8192]{0}', space=vmem, size = 0x2000, scoped, tag = 'input window, operand 1, single buffered']
    #allocation6 [shape = 's32[1]{0}', space=sflag, size = 0x4, scoped, tag = 'scoped memory for tpu_custom_call.1']
    #allocation7 [shape = 'u8[512]{0}', space=vmem, size = 0x400, scoped, tag = 'input window, operand 5, single buffered']
    #allocation8 [shape = 'u8[8192]{0}', space=vmem, size = 0x2000, scoped, tag = 'input window, operand 11, single buffered']
    #allocation9 [shape = 's32[1]{0}', space=sflag, size = 0x4, scoped, tag = 'scoped memory for tpu_custom_call.1']
    #allocation10 [shape = 'u8[8192]{0}', space=vmem, size = 0x2000, scoped, tag = 'input window, operand 12, single buffered']
    #allocation11 [shape = 'u8[8192]{0}', space=vmem, size = 0x2000, scoped, tag = 'output window, operand 0']
    %18 = vsyncpa [#allocation3], 0
    %s19 = scalar_lea.sflag [#allocation3], 1
    %20 = vsyncpa %s19, 0
    %21 = vsyncpa [#allocation6], 0
    %22 = vsyncpa [#allocation9], 0
    %23 = vsyncpa [#allocation4], 0
    %s24 = scalar_lea.sflag [#allocation4], 1
    %25 = vsyncpa %s24, 0
    loop: start=0, step=1, limit=4
    $region2: #{tpu_custom_call.1} parent=1 // loop_pre_header
      _
    $region3: #{tpu_custom_call.1} parent=1 // loop_header
      %s27 = sphi 0, %s31
      %p28 = scmp.ge.s32.totalorder %s27, 4
      %s37 = sphi 0, %s39
      %s40 = sphi 0, %s37
      %s41 = sphi 0, %s40
      %s57 = sphi 0, %s41
      %s61 = sphi 0, %s61
      %s63 = sphi 0, %s61
      %s64 = sphi 0, %s63
      %s78 = sphi 0, %s64
      %s82 = sphi 0, %s82
      %s84 = sphi 0, %s82
      %s85 = sphi 0, %s84
      %s99 = sphi 0, %s85
      %s103 = sphi 0, %s103
      %s105 = sphi 0, %s103
      %s106 = sphi 0, %s105
      %s120 = sphi 0, %s106
      %s124 = sphi 0, %s124
      %s126 = sphi 0, %s124
      %s127 = sphi 0, %s126
      %s141 = sphi 0, %s127
      %s145 = sphi 0, %s145
      %s147 = sphi 0, %s145
      %s148 = sphi 0, %s147
      %s162 = sphi 0, %s148
      %s166 = sphi 0, %s166
      %s168 = sphi 0, %s166
      %s169 = sphi 0, %s168
      %s183 = sphi 0, %s169
      %s187 = sphi 0, %s187
      %s189 = sphi 0, %s187
      %s190 = sphi 0, %s189
      %s204 = sphi 0, %s190
      %s208 = sphi 0, %s208
      %s210 = sphi 0, %s208
      %s211 = sphi 0, %s210
      %s225 = sphi 0, %s211
      %s231 = sphi 0, %s233
      %s234 = sphi 0, %s231
      %s235 = sphi 0, %s234
      %s251 = sphi 0, %s235
      %s257 = sphi 0, %s259
      %s260 = sphi 0, %s257
      %s261 = sphi 0, %s260
      %s277 = sphi 0, %s261
      %s281 = sphi 0, %s281
      %s283 = sphi 0, %s281
      %s284 = sphi 0, %s283
      %s298 = sphi 0, %s284
      %s302 = sphi 0, %s302
      %s304 = sphi 0, %s302
      %s305 = sphi 0, %s304
      %s319 = sphi 0, %s305
      %s325 = sphi 0, %s327
      %s328 = sphi 0, %s325
      %s329 = sphi 0, %s328
      %s345 = sphi 0, %s329
    $region4: #{tpu_custom_call.1} parent=1 // loop_header_branch
      %30 = sbr.rel (%p28) target = $region8
    $region5: #{tpu_custom_call.1} parent=1 // loop_body
      %s32 = ssub.s32 %s27, 1
      %s33 = ssub.s32 %s27, 2
      %s34 = sadd.s32 %s27, 1
      %s35 = ssub.s32 %s27, %s34
      %p36 = scmp.eq.s32.totalorder %s35, 0
      %s38 = sadd.s32 %s37, 1
      %s39 = scalar_select %p36, %s37, %s38
      %p42 = pneg %p36
      %p43 = scmp.eq.s32.totalorder %s27, 1
      %p44 = por %p42, %p43
      %p45 = scmp.ne.s32.totalorder %s37, %s40
      %p46 = scmp.eq.s32.totalorder %s27, 0
      %p47 = por %p45, %p46
      %p48 = scmp.ne.s32.totalorder %s37, %s40
      %p49 = scmp.eq.s32.totalorder %s32, 1
      %p50 = por %p48, %p49
      %p51 = scmp.ne.s32.totalorder %s40, %s41
      %p52 = scmp.eq.s32.totalorder %s32, 0
      %p53 = por %p51, %p52
      %p54 = scmp.ne.s32.totalorder %s40, %s41
      %p55 = scmp.eq.s32.totalorder %s33, 1
      %p56 = por %p54, %p55
      %p58 = scmp.ne.s32.totalorder %s41, %s57
      %p59 = scmp.eq.s32.totalorder %s33, 0
      %p60 = por %p58, %p59
      %s62 = sadd.s32 %s61, 1
      %p65 = scmp.eq.s32.totalorder %s27, 1
      %p66 = scmp.ne.s32.totalorder %s61, %s63
      %p67 = scmp.eq.s32.totalorder %s27, 0
      %p68 = por %p66, %p67
      %p69 = scmp.ne.s32.totalorder %s61, %s63
      %p70 = scmp.eq.s32.totalorder %s32, 1
      %p71 = por %p69, %p70
      %p72 = scmp.ne.s32.totalorder %s63, %s64
      %p73 = scmp.eq.s32.totalorder %s32, 0
      %p74 = por %p72, %p73
      %p75 = scmp.ne.s32.totalorder %s63, %s64
      %p76 = scmp.eq.s32.totalorder %s33, 1
      %p77 = por %p75, %p76
      %p79 = scmp.ne.s32.totalorder %s64, %s78
      %p80 = scmp.eq.s32.totalorder %s33, 0
      %p81 = por %p79, %p80
      %s83 = sadd.s32 %s82, 1
      %p86 = scmp.eq.s32.totalorder %s27, 1
      %p87 = scmp.ne.s32.totalorder %s82, %s84
      %p88 = scmp.eq.s32.totalorder %s27, 0
      %p89 = por %p87, %p88
      %p90 = scmp.ne.s32.totalorder %s82, %s84
      %p91 = scmp.eq.s32.totalorder %s32, 1
      %p92 = por %p90, %p91
      %p93 = scmp.ne.s32.totalorder %s84, %s85
      %p94 = scmp.eq.s32.totalorder %s32, 0
      %p95 = por %p93, %p94
      %p96 = scmp.ne.s32.totalorder %s84, %s85
      %p97 = scmp.eq.s32.totalorder %s33, 1
      %p98 = por %p96, %p97
      %p100 = scmp.ne.s32.totalorder %s85, %s99
      %p101 = scmp.eq.s32.totalorder %s33, 0
      %p102 = por %p100, %p101
      %s104 = sadd.s32 %s103, 1
      %p107 = scmp.eq.s32.totalorder %s27, 1
      %p108 = scmp.ne.s32.totalorder %s103, %s105
      %p109 = scmp.eq.s32.totalorder %s27, 0
      %p110 = por %p108, %p109
      %p111 = scmp.ne.s32.totalorder %s103, %s105
      %p112 = scmp.eq.s32.totalorder %s32, 1
      %p113 = por %p111, %p112
      %p114 = scmp.ne.s32.totalorder %s105, %s106
      %p115 = scmp.eq.s32.totalorder %s32, 0
      %p116 = por %p114, %p115
      %p117 = scmp.ne.s32.totalorder %s105, %s106
      %p118 = scmp.eq.s32.totalorder %s33, 1
      %p119 = por %p117, %p118
      %p121 = scmp.ne.s32.totalorder %s106, %s120
      %p122 = scmp.eq.s32.totalorder %s33, 0
      %p123 = por %p121, %p122
      %s125 = sadd.s32 %s124, 1
      %p128 = scmp.eq.s32.totalorder %s27, 1
      %p129 = scmp.ne.s32.totalorder %s124, %s126
      %p130 = scmp.eq.s32.totalorder %s27, 0
      %p131 = por %p129, %p130
      %p132 = scmp.ne.s32.totalorder %s124, %s126
      %p133 = scmp.eq.s32.totalorder %s32, 1
      %p134 = por %p132, %p133
      %p135 = scmp.ne.s32.totalorder %s126, %s127
      %p136 = scmp.eq.s32.totalorder %s32, 0
      %p137 = por %p135, %p136
      %p138 = scmp.ne.s32.totalorder %s126, %s127
      %p139 = scmp.eq.s32.totalorder %s33, 1
      %p140 = por %p138, %p139
      %p142 = scmp.ne.s32.totalorder %s127, %s141
      %p143 = scmp.eq.s32.totalorder %s33, 0
      %p144 = por %p142, %p143
      %s146 = sadd.s32 %s145, 1
      %p149 = scmp.eq.s32.totalorder %s27, 1
      %p150 = scmp.ne.s32.totalorder %s145, %s147
      %p151 = scmp.eq.s32.totalorder %s27, 0
      %p152 = por %p150, %p151
      %p153 = scmp.ne.s32.totalorder %s145, %s147
      %p154 = scmp.eq.s32.totalorder %s32, 1
      %p155 = por %p153, %p154
      %p156 = scmp.ne.s32.totalorder %s147, %s148
      %p157 = scmp.eq.s32.totalorder %s32, 0
      %p158 = por %p156, %p157
      %p159 = scmp.ne.s32.totalorder %s147, %s148
      %p160 = scmp.eq.s32.totalorder %s33, 1
      %p161 = por %p159, %p160
      %p163 = scmp.ne.s32.totalorder %s148, %s162
      %p164 = scmp.eq.s32.totalorder %s33, 0
      %p165 = por %p163, %p164
      %s167 = sadd.s32 %s166, 1
      %p170 = scmp.eq.s32.totalorder %s27, 1
      %p171 = scmp.ne.s32.totalorder %s166, %s168
      %p172 = scmp.eq.s32.totalorder %s27, 0
      %p173 = por %p171, %p172
      %p174 = scmp.ne.s32.totalorder %s166, %s168
      %p175 = scmp.eq.s32.totalorder %s32, 1
      %p176 = por %p174, %p175
      %p177 = scmp.ne.s32.totalorder %s168, %s169
      %p178 = scmp.eq.s32.totalorder %s32, 0
      %p179 = por %p177, %p178
      %p180 = scmp.ne.s32.totalorder %s168, %s169
      %p181 = scmp.eq.s32.totalorder %s33, 1
      %p182 = por %p180, %p181
      %p184 = scmp.ne.s32.totalorder %s169, %s183
      %p185 = scmp.eq.s32.totalorder %s33, 0
      %p186 = por %p184, %p185
      %s188 = sadd.s32 %s187, 1
      %p191 = scmp.eq.s32.totalorder %s27, 1
      %p192 = scmp.ne.s32.totalorder %s187, %s189
      %p193 = scmp.eq.s32.totalorder %s27, 0
      %p194 = por %p192, %p193
      %p195 = scmp.ne.s32.totalorder %s187, %s189
      %p196 = scmp.eq.s32.totalorder %s32, 1
      %p197 = por %p195, %p196
      %p198 = scmp.ne.s32.totalorder %s189, %s190
      %p199 = scmp.eq.s32.totalorder %s32, 0
      %p200 = por %p198, %p199
      %p201 = scmp.ne.s32.totalorder %s189, %s190
      %p202 = scmp.eq.s32.totalorder %s33, 1
      %p203 = por %p201, %p202
      %p205 = scmp.ne.s32.totalorder %s190, %s204
      %p206 = scmp.eq.s32.totalorder %s33, 0
      %p207 = por %p205, %p206
      %s209 = sadd.s32 %s208, 1
      %p212 = scmp.eq.s32.totalorder %s27, 1
      %p213 = scmp.ne.s32.totalorder %s208, %s210
      %p214 = scmp.eq.s32.totalorder %s27, 0
      %p215 = por %p213, %p214
      %p216 = scmp.ne.s32.totalorder %s208, %s210
      %p217 = scmp.eq.s32.totalorder %s32, 1
      %p218 = por %p216, %p217
      %p219 = scmp.ne.s32.totalorder %s210, %s211
      %p220 = scmp.eq.s32.totalorder %s32, 0
      %p221 = por %p219, %p220
      %p222 = scmp.ne.s32.totalorder %s210, %s211
      %p223 = scmp.eq.s32.totalorder %s33, 1
      %p224 = por %p222, %p223
      %p226 = scmp.ne.s32.totalorder %s211, %s225
      %p227 = scmp.eq.s32.totalorder %s33, 0
      %p228 = por %p226, %p227
      %s229 = ssub.s32 %s27, %s34
      %p230 = scmp.eq.s32.totalorder %s229, 0
      %s232 = sadd.s32 %s231, 1
      %s233 = scalar_select %p230, %s231, %s232
      %p236 = pneg %p230
      %p237 = scmp.eq.s32.totalorder %s27, 1
      %p238 = por %p236, %p237
      %p239 = scmp.ne.s32.totalorder %s231, %s234
      %p240 = scmp.eq.s32.totalorder %s27, 0
      %p241 = por %p239, %p240
      %p242 = scmp.ne.s32.totalorder %s231, %s234
      %p243 = scmp.eq.s32.totalorder %s32, 1
      %p244 = por %p242, %p243
      %p245 = scmp.ne.s32.totalorder %s234, %s235
      %p246 = scmp.eq.s32.totalorder %s32, 0
      %p247 = por %p245, %p246
      %p248 = scmp.ne.s32.totalorder %s234, %s235
      %p249 = scmp.eq.s32.totalorder %s33, 1
      %p250 = por %p248, %p249
      %p252 = scmp.ne.s32.totalorder %s235, %s251
      %p253 = scmp.eq.s32.totalorder %s33, 0
      %p254 = por %p252, %p253
      %s255 = ssub.s32 %s27, %s34
      %p256 = scmp.eq.s32.totalorder %s255, 0
      %s258 = sadd.s32 %s257, 1
      %s259 = scalar_select %p256, %s257, %s258
      %p262 = pneg %p256
      %p263 = scmp.eq.s32.totalorder %s27, 1
      %p264 = por %p262, %p263
      %p265 = scmp.ne.s32.totalorder %s257, %s260
      %p266 = scmp.eq.s32.totalorder %s27, 0
      %p267 = por %p265, %p266
      %p268 = scmp.ne.s32.totalorder %s257, %s260
      %p269 = scmp.eq.s32.totalorder %s32, 1
      %p270 = por %p268, %p269
      %p271 = scmp.ne.s32.totalorder %s260, %s261
      %p272 = scmp.eq.s32.totalorder %s32, 0
      %p273 = por %p271, %p272
      %p274 = scmp.ne.s32.totalorder %s260, %s261
      %p275 = scmp.eq.s32.totalorder %s33, 1
      %p276 = por %p274, %p275
      %p278 = scmp.ne.s32.totalorder %s261, %s277
      %p279 = scmp.eq.s32.totalorder %s33, 0
      %p280 = por %p278, %p279
      %s282 = sadd.s32 %s281, 1
      %p285 = scmp.eq.s32.totalorder %s27, 1
      %p286 = scmp.ne.s32.totalorder %s281, %s283
      %p287 = scmp.eq.s32.totalorder %s27, 0
      %p288 = por %p286, %p287
      %p289 = scmp.ne.s32.totalorder %s281, %s283
      %p290 = scmp.eq.s32.totalorder %s32, 1
      %p291 = por %p289, %p290
      %p292 = scmp.ne.s32.totalorder %s283, %s284
      %p293 = scmp.eq.s32.totalorder %s32, 0
      %p294 = por %p292, %p293
      %p295 = scmp.ne.s32.totalorder %s283, %s284
      %p296 = scmp.eq.s32.totalorder %s33, 1
      %p297 = por %p295, %p296
      %p299 = scmp.ne.s32.totalorder %s284, %s298
      %p300 = scmp.eq.s32.totalorder %s33, 0
      %p301 = por %p299, %p300
      %s303 = sadd.s32 %s302, 1
      %p306 = scmp.eq.s32.totalorder %s27, 1
      %p307 = scmp.ne.s32.totalorder %s302, %s304
      %p308 = scmp.eq.s32.totalorder %s27, 0
      %p309 = por %p307, %p308
      %p310 = scmp.ne.s32.totalorder %s302, %s304
      %p311 = scmp.eq.s32.totalorder %s32, 1
      %p312 = por %p310, %p311
      %p313 = scmp.ne.s32.totalorder %s304, %s305
      %p314 = scmp.eq.s32.totalorder %s32, 0
      %p315 = por %p313, %p314
      %p316 = scmp.ne.s32.totalorder %s304, %s305
      %p317 = scmp.eq.s32.totalorder %s33, 1
      %p318 = por %p316, %p317
      %p320 = scmp.ne.s32.totalorder %s305, %s319
      %p321 = scmp.eq.s32.totalorder %s33, 0
      %p322 = por %p320, %p321
      %s323 = ssub.s32 %s27, %s34
      %p324 = scmp.eq.s32.totalorder %s323, 0
      %s326 = sadd.s32 %s325, 1
      %s327 = scalar_select %p324, %s325, %s326
      %p330 = pneg %p324
      %p331 = scmp.eq.s32.totalorder %s27, 1
      %p332 = por %p330, %p331
      %p333 = scmp.ne.s32.totalorder %s325, %s328
      %p334 = scmp.eq.s32.totalorder %s27, 0
      %p335 = por %p333, %p334
      %p336 = scmp.ne.s32.totalorder %s325, %s328
      %p337 = scmp.eq.s32.totalorder %s32, 1
      %p338 = por %p336, %p337
      %p339 = scmp.ne.s32.totalorder %s328, %s329
      %p340 = scmp.eq.s32.totalorder %s32, 0
      %p341 = por %p339, %p340
      %p342 = scmp.ne.s32.totalorder %s328, %s329
      %p343 = scmp.eq.s32.totalorder %s33, 1
      %p344 = por %p342, %p343
      %p346 = scmp.ne.s32.totalorder %s329, %s345
      %p347 = scmp.eq.s32.totalorder %s33, 0
      %p348 = por %p346, %p347
      %p349 = scmp.le.s32.totalorder 1, %s27
      %p350 = scmp.lt.s32.totalorder %s27, 3
      %p351 = pnand %p349, %p350
      %p352 = pneg %p351
      // Predicated region
      $region9: #{tpu_custom_call.1} parent=5 // pred_check
        _
      $region10: #{tpu_custom_call.1} parent=5 // pred_check_branch
        %354 = sbr.rel (%p351) target = $region12
      $region11: #{tpu_custom_call.1} parent=5 // pred_region
        %s355 = ssub.s32 %s27, 1
        // Predicated region
        $region13: #{tpu_custom_call.1} parent=11 // pred_check
          %p356 = pneg %p74
        $region14: #{tpu_custom_call.1} parent=11 // pred_check_branch
          %358 = sbr.rel (%p356) target = $region16
        $region15: #{tpu_custom_call.1} parent=11 // pred_region
          %s360 = ssub.s32 256, 256
          %361 = vsyncadd [#allocation6], %s360
          %s362 = sshll.u32 [#allocation5], 4
          %s363 = int_to_ptr.vmem [resolvable:$true] %s362
          %368 = dma.hbm_to_vmem [thread:$0]  %s1, 256, %s363, [#allocation6], 128, 128, 8
        $region16: #{tpu_custom_call.1} parent=11 // pred_fallthru
          _
        // Predicated region
        $region17: #{tpu_custom_call.1} parent=11 // pred_check
          %p369 = pneg %p95
        $region18: #{tpu_custom_call.1} parent=11 // pred_check_branch
          %371 = sbr.rel (%p369) target = $region20
        $region19: #{tpu_custom_call.1} parent=11 // pred_region
          _
        $region20: #{tpu_custom_call.1} parent=11 // pred_fallthru
          _
        // Predicated region
        $region21: #{tpu_custom_call.1} parent=11 // pred_check
          %p372 = pneg %p116
        $region22: #{tpu_custom_call.1} parent=11 // pred_check_branch
          %374 = sbr.rel (%p372) target = $region24
        $region23: #{tpu_custom_call.1} parent=11 // pred_region
          _
        $region24: #{tpu_custom_call.1} parent=11 // pred_fallthru
          _
        // Predicated region
        $region25: #{tpu_custom_call.1} parent=11 // pred_check
          %p375 = pneg %p137
        $region26: #{tpu_custom_call.1} parent=11 // pred_check_branch
          %377 = sbr.rel (%p375) target = $region28
        $region27: #{tpu_custom_call.1} parent=11 // pred_region
          _
        $region28: #{tpu_custom_call.1} parent=11 // pred_fallthru
          _
        // Predicated region
        $region29: #{tpu_custom_call.1} parent=11 // pred_check
          %p378 = pneg %p158
        $region30: #{tpu_custom_call.1} parent=11 // pred_check_branch
          %380 = sbr.rel (%p378) target = $region32
        $region31: #{tpu_custom_call.1} parent=11 // pred_region
          %s382 = ssub.s32 16, 16
          %383 = vsyncadd [#allocation6], %s382
          %s385 = sshll.u32 [#allocation7], 4
          %s386 = int_to_ptr.vmem [resolvable:$true] %s385
          %388 = dma.hbm_to_vmem [thread:$0]  %s5, 16, %s386, [#allocation6]
        $region32: #{tpu_custom_call.1} parent=11 // pred_fallthru
          _
        // Predicated region
        $region33: #{tpu_custom_call.1} parent=11 // pred_check
          %p389 = pneg %p179
        $region34: #{tpu_custom_call.1} parent=11 // pred_check_branch
          %391 = sbr.rel (%p389) target = $region36
        $region35: #{tpu_custom_call.1} parent=11 // pred_region
          _
        $region36: #{tpu_custom_call.1} parent=11 // pred_fallthru
          _
        // Predicated region
        $region37: #{tpu_custom_call.1} parent=11 // pred_check
          %p392 = pneg %p200
        $region38: #{tpu_custom_call.1} parent=11 // pred_check_branch
          %394 = sbr.rel (%p392) target = $region40
        $region39: #{tpu_custom_call.1} parent=11 // pred_region
          _
        $region40: #{tpu_custom_call.1} parent=11 // pred_fallthru
          _
        // Predicated region
        $region41: #{tpu_custom_call.1} parent=11 // pred_check
          %p395 = pneg %p221
        $region42: #{tpu_custom_call.1} parent=11 // pred_check_branch
          %397 = sbr.rel (%p395) target = $region44
        $region43: #{tpu_custom_call.1} parent=11 // pred_region
          _
        $region44: #{tpu_custom_call.1} parent=11 // pred_fallthru
          _
        // Predicated region
        $region45: #{tpu_custom_call.1} parent=11 // pred_check
          %p398 = pneg %p294
        $region46: #{tpu_custom_call.1} parent=11 // pred_check_branch
          %400 = sbr.rel (%p398) target = $region48
        $region47: #{tpu_custom_call.1} parent=11 // pred_region
          %s402 = ssub.s32 256, 256
          %403 = vsyncadd [#allocation9], %s402
          %s404 = sshll.u32 [#allocation8], 4
          %s405 = int_to_ptr.vmem [resolvable:$true] %s404
          %410 = dma.hbm_to_vmem [thread:$0]  %s11, 256, %s405, [#allocation9], 128, 128, 8
        $region48: #{tpu_custom_call.1} parent=11 // pred_fallthru
          _
        // Predicated region
        $region49: #{tpu_custom_call.1} parent=11 // pred_check
          %p411 = pneg %p315
        $region50: #{tpu_custom_call.1} parent=11 // pred_check_branch
          %413 = sbr.rel (%p411) target = $region52
        $region51: #{tpu_custom_call.1} parent=11 // pred_region
          %s415 = ssub.s32 256, 256
          %416 = vsyncadd [#allocation9], %s415
          %s417 = sshll.u32 [#allocation10], 4
          %s418 = int_to_ptr.vmem [resolvable:$true] %s417
          %423 = dma.hbm_to_vmem [thread:$0]  %s12, 256, %s418, [#allocation9], 128, 128, 8
        $region52: #{tpu_custom_call.1} parent=11 // pred_fallthru
          _
      $region12: #{tpu_custom_call.1} parent=5 // pred_fallthru
        _
      %p424 = scmp.lt.s32.totalorder %s27, 2
      // Predicated region
      $region53: #{tpu_custom_call.1} parent=5 // pred_check
        %p425 = pneg %p424
      $region54: #{tpu_custom_call.1} parent=5 // pred_check_branch
        %427 = sbr.rel (%p425) target = $region56
      $region55: #{tpu_custom_call.1} parent=5 // pred_region
        // Predicated region
        $region57: #{tpu_custom_call.1} parent=55 // pred_check
          %p428 = pneg %p47
        $region58: #{tpu_custom_call.1} parent=55 // pred_check_branch
          %430 = sbr.rel (%p428) target = $region60
        $region59: #{tpu_custom_call.1} parent=55 // pred_region
          %s431 = sand.u32 %s37, 1
          %s432 = scalar_lea.sflag [#allocation3], %s431
          %s433 = sand.u32 %s37, 1
          %s434 = smul.addr %s433, 8
          %s435 = scalar_lea.vmem [#allocation2], %s434
          %s437 = ssub.s32 128, 128
          %438 = vsyncadd %s432, %s437
          %s439 = smul.addr %s27, 128
          %s440 = scalar_lea.hbm %s0, %s439
          %s442 = sshll.u32 %s435, 4
          %s443 = int_to_ptr.vmem [resolvable:$true] %s442
          %445 = dma.hbm_to_vmem [thread:$0]  %s440, 128, %s443, %s432
        $region60: #{tpu_custom_call.1} parent=55 // pred_fallthru
          _
        // Predicated region
        $region61: #{tpu_custom_call.1} parent=55 // pred_check
          %p446 = pneg %p241
        $region62: #{tpu_custom_call.1} parent=55 // pred_check_branch
          %448 = sbr.rel (%p446) target = $region64
        $region63: #{tpu_custom_call.1} parent=55 // pred_region
          %p449 = scmp.lt.s32.totalorder %s27, 1
          %s450 = scalar_select %p449, %s27, 1
          %s451 = smul.addr %s450, 8
          %s452 = scalar_lea.vmem %s9, %s451
        $region64: #{tpu_custom_call.1} parent=55 // pred_fallthru
          _
        // Predicated region
        $region65: #{tpu_custom_call.1} parent=55 // pred_check
          %p453 = pneg %p267
        $region66: #{tpu_custom_call.1} parent=55 // pred_check_branch
          %455 = sbr.rel (%p453) target = $region68
        $region67: #{tpu_custom_call.1} parent=55 // pred_region
          %p456 = scmp.lt.s32.totalorder %s27, 1
          %s457 = scalar_select %p456, %s27, 1
          %s458 = smul.addr %s457, 8
          %s459 = scalar_lea.vmem %s10, %s458
        $region68: #{tpu_custom_call.1} parent=55 // pred_fallthru
          _
      $region56: #{tpu_custom_call.1} parent=5 // pred_fallthru
        _
      %p460 = scmp.le.s32.totalorder 1, %s27
      %p461 = scmp.lt.s32.totalorder %s27, 3
      %p462 = pnand %p460, %p461
      %p463 = pneg %p462
      // Predicated region
      $region69: #{tpu_custom_call.1} parent=5 // pred_check
        _
      $region70: #{tpu_custom_call.1} parent=5 // pred_check_branch
        %465 = sbr.rel (%p462) target = $region72
      $region71: #{tpu_custom_call.1} parent=5 // pred_region
        %s466 = ssub.s32 %s27, 1
        %s467 = sand.u32 %s40, 1
        %s468 = scalar_lea.sflag [#allocation3], %s467
        %s469 = sand.u32 %s40, 1
        %s470 = smul.addr %s469, 8
        %s471 = scalar_lea.vmem [#allocation2], %s470
        // Predicated region
        $region73: #{tpu_custom_call.1} parent=71 // pred_check
          %p472 = pneg %p53
        $region74: #{tpu_custom_call.1} parent=71 // pred_check_branch
          %474 = sbr.rel (%p472) target = $region76
        $region75: #{tpu_custom_call.1} parent=71 // pred_region
          %475 = dma.done %s468, 128
        $region76: #{tpu_custom_call.1} parent=71 // pred_fallthru
          _
        // Predicated region
        $region77: #{tpu_custom_call.1} parent=71 // pred_check
          %p476 = pneg %p74
        $region78: #{tpu_custom_call.1} parent=71 // pred_check_branch
          %478 = sbr.rel (%p476) target = $region80
        $region79: #{tpu_custom_call.1} parent=71 // pred_region
          %479 = dma.done [#allocation6], 256
        $region80: #{tpu_custom_call.1} parent=71 // pred_fallthru
          _
        // Predicated region
        $region81: #{tpu_custom_call.1} parent=71 // pred_check
          %p480 = pneg %p158
        $region82: #{tpu_custom_call.1} parent=71 // pred_check_branch
          %482 = sbr.rel (%p480) target = $region84
        $region83: #{tpu_custom_call.1} parent=71 // pred_region
          %483 = dma.done [#allocation6], 16
        $region84: #{tpu_custom_call.1} parent=71 // pred_fallthru
          _
        // Predicated region
        $region85: #{tpu_custom_call.1} parent=71 // pred_check
          %p484 = pneg %p294
        $region86: #{tpu_custom_call.1} parent=71 // pred_check_branch
          %486 = sbr.rel (%p484) target = $region88
        $region87: #{tpu_custom_call.1} parent=71 // pred_region
          %487 = dma.done [#allocation9], 256
        $region88: #{tpu_custom_call.1} parent=71 // pred_fallthru
          _
        // Predicated region
        $region89: #{tpu_custom_call.1} parent=71 // pred_check
          %p488 = pneg %p315
        $region90: #{tpu_custom_call.1} parent=71 // pred_check_branch
          %490 = sbr.rel (%p488) target = $region92
        $region91: #{tpu_custom_call.1} parent=71 // pred_region
          %491 = dma.done [#allocation9], 256
        $region92: #{tpu_custom_call.1} parent=71 // pred_fallthru
          _
        %s492 = sand.u32 %s40, 1
        %s493 = scalar_lea.sflag [#allocation3], %s492
        %s494 = sand.u32 %s40, 1
        %s495 = smul.addr %s494, 8
        %s496 = scalar_lea.vmem [#allocation2], %s495
        %p497 = pneg %p53
        %p498 = pneg %p50
        %p499 = pneg %p74
        %p500 = pneg %p71
        %p501 = pneg %p95
        %p502 = pneg %p92
        %p503 = pneg %p116
        %p504 = pneg %p113
        %p505 = pneg %p137
        %p506 = pneg %p134
        %p507 = pneg %p158
        %p508 = pneg %p155
        %p509 = pneg %p179
        %p510 = pneg %p176
        %p511 = pneg %p200
        %p512 = pneg %p197
        %p513 = pneg %p221
        %p514 = pneg %p218
        %p515 = scmp.lt.s32.totalorder %s32, 1
        %s516 = scalar_select %p515, %s32, 1
        %s517 = smul.addr %s516, 8
        %s518 = scalar_lea.vmem %s9, %s517
        %p519 = pneg %p247
        %p520 = pneg %p244
        %p521 = scmp.lt.s32.totalorder %s32, 1
        %s522 = scalar_select %p521, %s32, 1
        %s523 = smul.addr %s522, 8
        %s524 = scalar_lea.vmem %s10, %s523
        %p525 = pneg %p273
        %p526 = pneg %p270
        %p527 = pneg %p294
        %p528 = pneg %p291
        %p529 = pneg %p315
        %p530 = pneg %p312
        %p531 = pneg %p341
        %p532 = pneg %p338
        %s533 = sand.u32 %s328, 1
        %s534 = scalar_lea.sflag [#allocation4], %s533
        %s535 = sand.u32 %s328, 1
        %s536 = smul.addr %s535, 8
        %s537 = scalar_lea.vmem [#allocation11], %s536
        %p538 = scmp.lt.s32.totalorder %s32, 1
        %s539 = scalar_select %p538, %s32, 1
        %s540 = smul.addr %s539, 8
        %s541 = scalar_lea.vmem %s9, %s540
        %p542 = scmp.lt.s32.totalorder %s32, 1
        %s543 = scalar_select %p542, %s32, 1
        %s544 = smul.addr %s543, 8
        %s545 = scalar_lea.vmem %s10, %s544
        %v546 = vld [vmem:[%s2] sm:$0x1]
        %v547 = vld [vmem:[%s471] sm:$0xff]
        %v548 = vmul.f32 %v547, %v547
        %vm549 = vcmask 261120
        %v550 = vsel %vm549, %v548, 0.0
        %551 = vadd.xlane.f32.xlu0 %v550
        %v552 = vpop.xlane.xlu0 %551
        %v553 = vrcp.pop 32.0
        %v554 = vmul.f32 %v552, %v553
        %v555 = vadd.f32 %v554, 1e-05
        %v556 = vrsqrt.pop %v555
        %v557 = vmul.f32 %v547, %v556
        %v559 = vlaneseq
        %v560 = vshrl.u32 %v559, 7
        %v561 = vsub.s32 0, %v560
        %v562 = vrot.slane %v546, %v561
        %v564 = vmul.f32 %v557, %v562
        %v565 = vld [vmem:[%s4] sm:$0xff]
        %v566 = vld [vmem:[%s4 + $0x8] sm:$0xff]
        %v567 = vld [vmem:[%s4 + $0x10] sm:$0xff]
        %v568 = vld [vmem:[%s4 + $0x18] sm:$0xff]
        %v569 = vld [vmem:[#allocation7] sm:$0x1]
        %v571 = vlaneseq
        %v572 = vshrl.u32 %v571, 7
        %v573 = vsub.s32 0, %v572
        %v574 = vrot.slane %v569, %v573
        %v577 = vsel %vm549, %v564, 0
        %579 = vmatprep.subr.mxu0 0.0
        %580 = vmatpush1.msra.mxu0 %v565
        %581 = vmatprep.subr.mxu0 0.0
        %582 = vmatpush1.msra.mxu0 %v566
        %583 = vmatprep.subr.mxu0 0.0
        %584 = vmatpush1.msra.mxu0 %v567
        %585 = vmatprep.subr.mxu0 0.0
        %586 = vmatpush1.msra.mxu0 %v568
        %587 = vmatprep.subr.mxu0 0.0
        %588 = vmatpush1.msra.mxu0 0.0
        %589 = vmatprep.subr.mxu0 0.0
        %590 = vmatpush1.msra.mxu0 0.0
        %591 = vmatprep.subr.mxu0 0.0
        %592 = vmatpush1.msra.mxu0 0.0
        %593 = vmatprep.subr.mxu0 0.0
        %594 = vmatpush1.msra.mxu0 0.0
        %595 = vmatprep.subr.mxu0 0.0
        %596 = vmatpush1.msra.mxu0 0.0
        %597 = vmatprep.subr.mxu0 0.0
        %598 = vmatpush1.msra.mxu0 0.0
        %599 = vmatprep.subr.mxu0 0.0
        %600 = vmatpush1.msra.mxu0 0.0
        %601 = vmatprep.subr.mxu0 0.0
        %602 = vmatpush1.msra.mxu0 0.0
        %603 = vmatprep.subr.mxu0 0.0
        %604 = vmatpush1.msra.mxu0 0.0
        %605 = vmatprep.subr.mxu0 0.0
        %606 = vmatpush1.msra.mxu0 0.0
        %607 = vmatprep.subr.mxu0 0.0
        %608 = vmatpush1.msra.mxu0 0.0
        %609 = vmatprep.subr.mxu0 0.0
        %610 = vmatpush1.msra.mxu0 0.0
        %611 = vmatprep.subr.mxu0 0.0
        %612 = vmatpush1.msra.mxu0 0.0
        %613 = vmatprep.subr.mxu0 0.0
        %614 = vmatpush1.msra.mxu0 0.0
        %615 = vmatprep.subr.mxu0 0.0
        %616 = vmatpush1.msra.mxu0 0.0
        %617 = vmatprep.subr.mxu0 0.0
        %618 = vmatpush1.msra.mxu0 0.0
        %619 = vmatprep.subr.mxu0 0.0
        %620 = vmatpush1.msra.mxu0 0.0
        %621 = vmatprep.subr.mxu0 0.0
        %622 = vmatpush1.msra.mxu0 0.0
        %623 = vmatprep.subr.mxu0 0.0
        %624 = vmatpush1.msra.mxu0 0.0
        %625 = vmatprep.subr.mxu0 0.0
        %626 = vmatpush1.msra.mxu0 0.0
        %627 = vmatprep.subr.mxu0 0.0
        %628 = vmatpush1.msra.mxu0 0.0
        %629 = vmatprep.subr.mxu0 0.0
        %630 = vmatpush1.msra.mxu0 0.0
        %631 = vmatprep.subr.mxu0 0.0
        %632 = vmatpush1.msra.mxu0 0.0
        %633 = vmatprep.subr.mxu0 0.0
        %634 = vmatpush1.msra.mxu0 0.0
        %635 = vmatprep.subr.mxu0 0.0
        %636 = vmatpush1.msra.mxu0 0.0
        %637 = vmatprep.subr.mxu0 0.0
        %638 = vmatpush1.msra.mxu0 0.0
        %639 = vmatprep.subr.mxu0 0.0
        %640 = vmatpush1.msra.mxu0 0.0
        %641 = vmatprep.subr.mxu0 0.0
        %642 = vmatpush1.msra.mxu0 0.0
        %643 = vmatprep.mubr.f32.mxu0 0.0
        %644 = vmatmul.mubr.f32.gmra.mrb[0].mxu0 %v577
        %v645 = vpop.f32.mrb[0].mxu0
        %v646 = vadd.f32 %v574, %v645
        %v647 = vpop.f32.mrb[0].mxu0
        %648 = vdwg.mxu0
        %v649 = vld [vmem:[%s541] sm:$0xff]
        %v650 = vmul.f32 %v646, %v649
        %v651 = vld [vmem:[%s545] sm:$0xff]
        %653 = vrot.lane.b32.xlu0 %v651, 64
        %v654 = vpop.permute.xlu0 %653
        %v656 = vmul.f32 %v646, %v654
        %658 = vrot.lane.b32.xlu0 %v656, 64
        %v659 = vpop.permute.xlu0 %658
        %v661 = vadd.f32 %v650, %v659
        %v662 = vld [vmem:[#allocation5] sm:$0xff]
        %v663 = vld [vmem:[#allocation5 + $0x8] sm:$0xff]
        %v664 = vmul.f32 %v662, %v662
        %v665 = vmul.f32 %v663, %v663
        %v666 = vsel %vm549, %v664, 0.0
        %667 = vadd.xlane.f32.xlu0 %v666
        %v668 = vpop.xlane.xlu0 %667
        %v669 = vsel %vm549, %v665, 0.0
        %670 = vadd.xlane.f32.xlu0 %v669
        %v671 = vpop.xlane.xlu0 %670
        %v672 = vmul.f32 %v668, %v553
        %v673 = vmul.f32 %v671, %v553
        %v674 = vadd.f32 %v672, 1e-05
        %v675 = vadd.f32 %v673, 1e-05
        %v676 = vrsqrt.pop %v674
        %v677 = vrsqrt.pop %v675
        %v678 = vmul.f32 %v662, %v676
        %v679 = vmul.f32 %v663, %v677
        %v680 = vmul.f32 %v678, %v562
        %v681 = vmul.f32 %v679, %v562
        %v683 = vsel %vm549, %v680, 0
        %v686 = vsel %vm549, %v681, 0
        %688 = vmatprep.subr.mxu0 0.0
        %689 = vmatpush1.msra.mxu0 %v565
        %690 = vmatprep.subr.mxu0 0.0
        %691 = vmatpush1.msra.mxu0 %v566
        %692 = vmatprep.subr.mxu0 0.0
        %693 = vmatpush1.msra.mxu0 %v567
        %694 = vmatprep.subr.mxu0 0.0
        %695 = vmatpush1.msra.mxu0 %v568
        %696 = vmatprep.subr.mxu0 0.0
        %697 = vmatpush1.msra.mxu0 0.0
        %698 = vmatprep.subr.mxu0 0.0
        %699 = vmatpush1.msra.mxu0 0.0
        %700 = vmatprep.subr.mxu0 0.0
        %701 = vmatpush1.msra.mxu0 0.0
        %702 = vmatprep.subr.mxu0 0.0
        %703 = vmatpush1.msra.mxu0 0.0
        %704 = vmatprep.subr.mxu0 0.0
        %705 = vmatpush1.msra.mxu0 0.0
        %706 = vmatprep.subr.mxu0 0.0
        %707 = vmatpush1.msra.mxu0 0.0
        %708 = vmatprep.subr.mxu0 0.0
        %709 = vmatpush1.msra.mxu0 0.0
        %710 = vmatprep.subr.mxu0 0.0
        %711 = vmatpush1.msra.mxu0 0.0
        %712 = vmatprep.subr.mxu0 0.0
        %713 = vmatpush1.msra.mxu0 0.0
        %714 = vmatprep.subr.mxu0 0.0
        %715 = vmatpush1.msra.mxu0 0.0
        %716 = vmatprep.subr.mxu0 0.0
        %717 = vmatpush1.msra.mxu0 0.0
        %718 = vmatprep.subr.mxu0 0.0
        %719 = vmatpush1.msra.mxu0 0.0
        %720 = vmatprep.subr.mxu0 0.0
        %721 = vmatpush1.msra.mxu0 0.0
        %722 = vmatprep.subr.mxu0 0.0
        %723 = vmatpush1.msra.mxu0 0.0
        %724 = vmatprep.subr.mxu0 0.0
        %725 = vmatpush1.msra.mxu0 0.0
        %726 = vmatprep.subr.mxu0 0.0
        %727 = vmatpush1.msra.mxu0 0.0
        %728 = vmatprep.subr.mxu0 0.0
        %729 = vmatpush1.msra.mxu0 0.0
        %730 = vmatprep.subr.mxu0 0.0
        %731 = vmatpush1.msra.mxu0 0.0
        %732 = vmatprep.subr.mxu0 0.0
        %733 = vmatpush1.msra.mxu0 0.0
        %734 = vmatprep.subr.mxu0 0.0
        %735 = vmatpush1.msra.mxu0 0.0
        %736 = vmatprep.subr.mxu0 0.0
        %737 = vmatpush1.msra.mxu0 0.0
        %738 = vmatprep.subr.mxu0 0.0
        %739 = vmatpush1.msra.mxu0 0.0
        %740 = vmatprep.subr.mxu0 0.0
        %741 = vmatpush1.msra.mxu0 0.0
        %742 = vmatprep.subr.mxu0 0.0
        %743 = vmatpush1.msra.mxu0 0.0
        %744 = vmatprep.subr.mxu0 0.0
        %745 = vmatpush1.msra.mxu0 0.0
        %746 = vmatprep.subr.mxu0 0.0
        %747 = vmatpush1.msra.mxu0 0.0
        %748 = vmatprep.subr.mxu0 0.0
        %749 = vmatpush1.msra.mxu0 0.0
        %750 = vmatprep.subr.mxu0 0.0
        %751 = vmatpush1.msra.mxu0 0.0
        %752 = vmatprep.mubr.f32.mxu0 0.0
        %753 = vmatmul.mubr.f32.gmra.mrb[0].mxu0 %v683
        %v754 = vpop.f32.mrb[0].mxu0
        %v755 = vadd.f32 %v574, %v754
        %v756 = vpop.f32.mrb[0].mxu0
        %757 = vmatprep.mubr.f32.mxu0 0.0
        %758 = vmatmul.mubr.f32.gmra.mrb[0].mxu0 %v686
        %v759 = vpop.f32.mrb[0].mxu0
        %v760 = vadd.f32 %v574, %v759
        %v761 = vpop.f32.mrb[0].mxu0
        %762 = vdwg.mxu0
        %v763 = vld [vmem:[#allocation8] sm:$0xff]
        %v764 = vld [vmem:[#allocation8 + $0x8] sm:$0xff]
        %767 = vrot.lane.b32.xlu0 %v763, 32
        %v768 = vpop.permute.xlu0 %767
        %769 = vrot.lane.b32.xlu0 %v764, 32
        %v770 = vpop.permute.xlu0 %769
        %v773 = vmul.f32 %v755, %v768
        %v774 = vmul.f32 %v760, %v770
        %v775 = vld [vmem:[#allocation10] sm:$0xff]
        %v776 = vld [vmem:[#allocation10 + $0x8] sm:$0xff]
        %779 = vrot.lane.b32.xlu0 %v775, 96
        %v780 = vpop.permute.xlu0 %779
        %781 = vrot.lane.b32.xlu0 %v776, 96
        %v782 = vpop.permute.xlu0 %781
        %v785 = vmul.f32 %v755, %v780
        %v786 = vmul.f32 %v760, %v782
        %789 = vrot.lane.b32.xlu0 %v785, 64
        %v790 = vpop.permute.xlu0 %789
        %791 = vrot.lane.b32.xlu0 %v786, 64
        %v792 = vpop.permute.xlu0 %791
        %v795 = vadd.f32 %v773, %v790
        %v796 = vadd.f32 %v774, %v792
        %v797 = vld [vmem:[%s6] sm:$0xff]
        %v798 = vld [vmem:[%s6 + $0x8] sm:$0xff]
        %v799 = vld [vmem:[%s6 + $0x10] sm:$0xff]
        %v800 = vld [vmem:[%s6 + $0x18] sm:$0xff]
        %v801 = vlaneseq
        %v802 = vshrl.u32 %v801, 7
        %v803 = vadd.s32 %v802, 8
        %v804 = vlaneseq
        %v805 = vand.u32 %v804, 127
        %s806 = smul.u32 %s32, 8
        %v807 = vand.u32 %v802, 7
        %v808 = vand.u32 %v803, 7
        %v809 = vstv %s806
        %v810 = vadd.s32 %v809, %v807
        %v811 = vadd.s32 %v809, %v808
        %vm812 = vcmp.ge.s32.totalorder %v810, %v805
        %vm813 = vcmp.ge.s32.totalorder %v811, %v805
        %815 = vrot.lane.b32.xlu0 %v661, 120
        %v816 = vpop.permute.xlu0 %815
        %819 = vrot.lane.b32.xlu0 %v795, 96
        %v820 = vpop.permute.xlu0 %819
        %821 = vrot.lane.b32.xlu0 %v796, 96
        %v822 = vpop.permute.xlu0 %821
        %vm823 = vcmask 64512
        %v824 = vsel %vm823, %v661, 0
        %v826 = vsel %vm823, %v816, 0
        %v828 = vsel %vm823, %v820, 0
        %v830 = vsel %vm823, %v822, 0
        %832 = vmatprep.subr.mxu0 0.0
        %833 = vmatpush1.xpose.msra.mxu0 %v828
        %834 = vmatprep.subr.mxu0 0.0
        %835 = vmatpush1.xpose.msra.mxu0 %v830
        %836 = vmatprep.subr.mxu0 0.0
        %837 = vmatpush1.xpose.msra.mxu0 0.0
        %838 = vmatprep.subr.mxu0 0.0
        %839 = vmatpush1.xpose.msra.mxu0 0.0
        %840 = vmatprep.subr.mxu0 0.0
        %841 = vmatpush1.xpose.msra.mxu0 0.0
        %842 = vmatprep.subr.mxu0 0.0
        %843 = vmatpush1.xpose.msra.mxu0 0.0
        %844 = vmatprep.subr.mxu0 0.0
        %845 = vmatpush1.xpose.msra.mxu0 0.0
        %846 = vmatprep.subr.mxu0 0.0
        %847 = vmatpush1.xpose.msra.mxu0 0.0
        %848 = vmatprep.subr.mxu0 0.0
        %849 = vmatpush1.xpose.msra.mxu0 0.0
        %850 = vmatprep.subr.mxu0 0.0
        %851 = vmatpush1.xpose.msra.mxu0 0.0
        %852 = vmatprep.subr.mxu0 0.0
        %853 = vmatpush1.xpose.msra.mxu0 0.0
        %854 = vmatprep.subr.mxu0 0.0
        %855 = vmatpush1.xpose.msra.mxu0 0.0
        %856 = vmatprep.subr.mxu0 0.0
        %857 = vmatpush1.xpose.msra.mxu0 0.0
        %858 = vmatprep.subr.mxu0 0.0
        %859 = vmatpush1.xpose.msra.mxu0 0.0
        %860 = vmatprep.subr.mxu0 0.0
        %861 = vmatpush1.xpose.msra.mxu0 0.0
        %862 = vmatprep.subr.mxu0 0.0
        %863 = vmatpush1.xpose.msra.mxu0 0.0
        %864 = vmatprep.subr.mxu0 0.0
        %865 = vmatpush1.xpose.msra.mxu0 0.0
        %866 = vmatprep.subr.mxu0 0.0
        %867 = vmatpush1.xpose.msra.mxu0 0.0
        %868 = vmatprep.subr.mxu0 0.0
        %869 = vmatpush1.xpose.msra.mxu0 0.0
        %870 = vmatprep.subr.mxu0 0.0
        %871 = vmatpush1.xpose.msra.mxu0 0.0
        %872 = vmatprep.subr.mxu0 0.0
        %873 = vmatpush1.xpose.msra.mxu0 0.0
        %874 = vmatprep.subr.mxu0 0.0
        %875 = vmatpush1.xpose.msra.mxu0 0.0
        %876 = vmatprep.subr.mxu0 0.0
        %877 = vmatpush1.xpose.msra.mxu0 0.0
        %878 = vmatprep.subr.mxu0 0.0
        %879 = vmatpush1.xpose.msra.mxu0 0.0
        %880 = vmatprep.subr.mxu0 0.0
        %881 = vmatpush1.xpose.msra.mxu0 0.0
        %882 = vmatprep.subr.mxu0 0.0
        %883 = vmatpush1.xpose.msra.mxu0 0.0
        %884 = vmatprep.subr.mxu0 0.0
        %885 = vmatpush1.xpose.msra.mxu0 0.0
        %886 = vmatprep.subr.mxu0 0.0
        %887 = vmatpush1.xpose.msra.mxu0 0.0
        %888 = vmatprep.subr.mxu0 0.0
        %889 = vmatpush1.xpose.msra.mxu0 0.0
        %890 = vmatprep.subr.mxu0 0.0
        %891 = vmatpush1.xpose.msra.mxu0 0.0
        %892 = vmatprep.subr.mxu0 0.0
        %893 = vmatpush1.xpose.msra.mxu0 0.0
        %894 = vmatprep.subr.mxu0 0.0
        %895 = vmatpush1.xpose.msra.mxu0 0.0
        %896 = vmatprep.mubr.f32.mxu0 0.0
        %897 = vmatmul.mubr.f32.gmra.mrb[0].mxu0 %v824
        %v898 = vpop.f32.mrb[0].mxu0
        %v899 = vadd.f32 0.0, %v898
        %v900 = vpop.f32.mrb[0].mxu0
        %901 = vmatprep.mubr.f32.mxu0 0.0
        %902 = vmatmul.mubr.f32.gmra.mrb[0].mxu0 %v826
        %v903 = vpop.f32.mrb[0].mxu0
        %v904 = vadd.f32 0.0, %v903
        %v905 = vpop.f32.mrb[0].mxu0
        %906 = vdwg.mxu0
        %v907 = vmul.f32 %v899, 0.35355338
        %v908 = vmul.f32 %v904, 0.35355338
        %v909 = vsel %vm812, %v907, -1e+30
        %v910 = vsel %vm813, %v908, -1e+30
        %vm911 = vcmask 130048
        %v912 = vsel %vm911, %v909, -inf
        %913 = vmax.xlane.f32.xlu0 %v912
        %v914 = vpop.xlane.xlu0 %913
        %v915 = vsel %vm911, %v910, -inf
        %916 = vmax.xlane.f32.xlu0 %v915
        %v917 = vpop.xlane.xlu0 %916
        %v918 = vsub.f32 %v909, %v914
        %v919 = vsub.f32 %v910, %v917
        %v920 = vmul.f32 %v918, 1.442695
        %v921 = vpow.pop %v920
        %v922 = vmul.f32 %v919, 1.442695
        %v923 = vpow.pop %v922
        %v924 = vsel %vm911, %v921, 0.0
        %925 = vadd.xlane.f32.xlu0 %v924
        %v926 = vpop.xlane.xlu0 %925
        %v927 = vsel %vm911, %v923, 0.0
        %928 = vadd.xlane.f32.xlu0 %v927
        %v929 = vpop.xlane.xlu0 %928
        %v930 = vrcp.pop %v926
        %v931 = vrcp.pop %v929
        %v932 = vmul.f32 %v921, %v930
        %v933 = vmul.f32 %v923, %v931
        %936 = vrot.lane.b32.xlu0 %v755, 80
        %v937 = vpop.permute.xlu0 %936
        %938 = vrot.lane.b32.xlu0 %v760, 80
        %v939 = vpop.permute.xlu0 %938
        %v943 = vsel %vm911, %v932, 0
        %v946 = vsel %vm911, %v933, 0
        %948 = vmatprep.subr.mxu0 0.0
        %949 = vmatpush1.msra.mxu0 %v937
        %950 = vmatprep.subr.mxu0 0.0
        %951 = vmatpush1.msra.mxu0 %v939
        %952 = vmatprep.subr.mxu0 0.0
        %953 = vmatpush1.msra.mxu0 0.0
        %954 = vmatprep.subr.mxu0 0.0
        %955 = vmatpush1.msra.mxu0 0.0
        %956 = vmatprep.subr.mxu0 0.0
        %957 = vmatpush1.msra.mxu0 0.0
        %958 = vmatprep.subr.mxu0 0.0
        %959 = vmatpush1.msra.mxu0 0.0
        %960 = vmatprep.subr.mxu0 0.0
        %961 = vmatpush1.msra.mxu0 0.0
        %962 = vmatprep.subr.mxu0 0.0
        %963 = vmatpush1.msra.mxu0 0.0
        %964 = vmatprep.subr.mxu0 0.0
        %965 = vmatpush1.msra.mxu0 0.0
        %966 = vmatprep.subr.mxu0 0.0
        %967 = vmatpush1.msra.mxu0 0.0
        %968 = vmatprep.subr.mxu0 0.0
        %969 = vmatpush1.msra.mxu0 0.0
        %970 = vmatprep.subr.mxu0 0.0
        %971 = vmatpush1.msra.mxu0 0.0
        %972 = vmatprep.subr.mxu0 0.0
        %973 = vmatpush1.msra.mxu0 0.0
        %974 = vmatprep.subr.mxu0 0.0
        %975 = vmatpush1.msra.mxu0 0.0
        %976 = vmatprep.subr.mxu0 0.0
        %977 = vmatpush1.msra.mxu0 0.0
        %978 = vmatprep.subr.mxu0 0.0
        %979 = vmatpush1.msra.mxu0 0.0
        %980 = vmatprep.subr.mxu0 0.0
        %981 = vmatpush1.msra.mxu0 0.0
        %982 = vmatprep.subr.mxu0 0.0
        %983 = vmatpush1.msra.mxu0 0.0
        %984 = vmatprep.subr.mxu0 0.0
        %985 = vmatpush1.msra.mxu0 0.0
        %986 = vmatprep.subr.mxu0 0.0
        %987 = vmatpush1.msra.mxu0 0.0
        %988 = vmatprep.subr.mxu0 0.0
        %989 = vmatpush1.msra.mxu0 0.0
        %990 = vmatprep.subr.mxu0 0.0
        %991 = vmatpush1.msra.mxu0 0.0
        %992 = vmatprep.subr.mxu0 0.0
        %993 = vmatpush1.msra.mxu0 0.0
        %994 = vmatprep.subr.mxu0 0.0
        %995 = vmatpush1.msra.mxu0 0.0
        %996 = vmatprep.subr.mxu0 0.0
        %997 = vmatpush1.msra.mxu0 0.0
        %998 = vmatprep.subr.mxu0 0.0
        %999 = vmatpush1.msra.mxu0 0.0
        %1000 = vmatprep.subr.mxu0 0.0
        %1001 = vmatpush1.msra.mxu0 0.0
        %1002 = vmatprep.subr.mxu0 0.0
        %1003 = vmatpush1.msra.mxu0 0.0
        %1004 = vmatprep.subr.mxu0 0.0
        %1005 = vmatpush1.msra.mxu0 0.0
        %1006 = vmatprep.subr.mxu0 0.0
        %1007 = vmatpush1.msra.mxu0 0.0
        %1008 = vmatprep.subr.mxu0 0.0
        %1009 = vmatpush1.msra.mxu0 0.0
        %1010 = vmatprep.subr.mxu0 0.0
        %1011 = vmatpush1.msra.mxu0 0.0
        %1012 = vmatprep.mubr.f32.mxu0 0.0
        %1013 = vmatmul.mubr.f32.gmra.mrb[0].mxu0 %v943
        %v1014 = vpop.f32.mrb[0].mxu0
        %v1015 = vadd.f32 0.0, %v1014
        %v1016 = vpop.f32.mrb[0].mxu0
        %1017 = vmatprep.mubr.f32.mxu0 0.0
        %1018 = vmatmul.mubr.f32.gmra.mrb[0].mxu0 %v946
        %v1019 = vpop.f32.mrb[0].mxu0
        %v1020 = vadd.f32 0.0, %v1019
        %v1021 = vpop.f32.mrb[0].mxu0
        %1022 = vdwg.mxu0
        %v1024 = vsel %vm823, %v1020, 0
        %1026 = vmatprep.subr.mxu0 0.0
        %1027 = vmatpush1.msra.mxu0 %v798
        %1028 = vmatprep.subr.mxu0 0.0
        %1029 = vmatpush1.msra.mxu0 0.0
        %1030 = vmatprep.subr.mxu0 0.0
        %1031 = vmatpush1.msra.mxu0 0.0
        %1032 = vmatprep.subr.mxu0 0.0
        %1033 = vmatpush1.msra.mxu0 0.0
        %1034 = vmatprep.subr.mxu0 0.0
        %1035 = vmatpush1.msra.mxu0 0.0
        %1036 = vmatprep.subr.mxu0 0.0
        %1037 = vmatpush1.msra.mxu0 0.0
        %1038 = vmatprep.subr.mxu0 0.0
        %1039 = vmatpush1.msra.mxu0 0.0
        %1040 = vmatprep.subr.mxu0 0.0
        %1041 = vmatpush1.msra.mxu0 0.0
        %1042 = vmatprep.subr.mxu0 0.0
        %1043 = vmatpush1.msra.mxu0 0.0
        %1044 = vmatprep.subr.mxu0 0.0
        %1045 = vmatpush1.msra.mxu0 0.0
        %1046 = vmatprep.subr.mxu0 0.0
        %1047 = vmatpush1.msra.mxu0 0.0
        %1048 = vmatprep.subr.mxu0 0.0
        %1049 = vmatpush1.msra.mxu0 0.0
        %1050 = vmatprep.subr.mxu0 0.0
        %1051 = vmatpush1.msra.mxu0 0.0
        %1052 = vmatprep.subr.mxu0 0.0
        %1053 = vmatpush1.msra.mxu0 0.0
        %1054 = vmatprep.subr.mxu0 0.0
        %1055 = vmatpush1.msra.mxu0 0.0
        %1056 = vmatprep.subr.mxu0 0.0
        %1057 = vmatpush1.msra.mxu0 0.0
        %1058 = vmatprep.subr.mxu0 0.0
        %1059 = vmatpush1.msra.mxu0 0.0
        %1060 = vmatprep.subr.mxu0 0.0
        %1061 = vmatpush1.msra.mxu0 0.0
        %1062 = vmatprep.subr.mxu0 0.0
        %1063 = vmatpush1.msra.mxu0 0.0
        %1064 = vmatprep.subr.mxu0 0.0
        %1065 = vmatpush1.msra.mxu0 0.0
        %1066 = vmatprep.subr.mxu0 0.0
        %1067 = vmatpush1.msra.mxu0 0.0
        %1068 = vmatprep.subr.mxu0 0.0
        %1069 = vmatpush1.msra.mxu0 0.0
        %1070 = vmatprep.subr.mxu0 0.0
        %1071 = vmatpush1.msra.mxu0 0.0
        %1072 = vmatprep.subr.mxu0 0.0
        %1073 = vmatpush1.msra.mxu0 0.0
        %1074 = vmatprep.subr.mxu0 0.0
        %1075 = vmatpush1.msra.mxu0 0.0
        %1076 = vmatprep.subr.mxu0 0.0
        %1077 = vmatpush1.msra.mxu0 0.0
        %1078 = vmatprep.subr.mxu0 0.0
        %1079 = vmatpush1.msra.mxu0 0.0
        %1080 = vmatprep.subr.mxu0 0.0
        %1081 = vmatpush1.msra.mxu0 0.0
        %1082 = vmatprep.subr.mxu0 0.0
        %1083 = vmatpush1.msra.mxu0 0.0
        %1084 = vmatprep.subr.mxu0 0.0
        %1085 = vmatpush1.msra.mxu0 0.0
        %1086 = vmatprep.subr.mxu0 0.0
        %1087 = vmatpush1.msra.mxu0 0.0
        %1088 = vmatprep.subr.mxu0 0.0
        %1089 = vmatpush1.msra.mxu0 0.0
        %1090 = vmatprep.mubr.f32.mxu0 0.0
        %1091 = vmatmul.mubr.f32.gmra.mrb[0].mxu0 %v1024
        %v1092 = vpop.f32.mrb[0].mxu0
        %v1093 = vadd.f32 0.0, %v1092
        %v1094 = vpop.f32.mrb[0].mxu0
        %1095 = vdwg.mxu0
        %v1097 = vsel %vm823, %v1015, 0
        %1099 = vmatprep.subr.mxu0 0.0
        %1100 = vmatpush1.msra.mxu0 %v797
        %1101 = vmatprep.subr.mxu0 0.0
        %1102 = vmatpush1.msra.mxu0 0.0
        %1103 = vmatprep.subr.mxu0 0.0
        %1104 = vmatpush1.msra.mxu0 0.0
        %1105 = vmatprep.subr.mxu0 0.0
        %1106 = vmatpush1.msra.mxu0 0.0
        %1107 = vmatprep.subr.mxu0 0.0
        %1108 = vmatpush1.msra.mxu0 0.0
        %1109 = vmatprep.subr.mxu0 0.0
        %1110 = vmatpush1.msra.mxu0 0.0
        %1111 = vmatprep.subr.mxu0 0.0
        %1112 = vmatpush1.msra.mxu0 0.0
        %1113 = vmatprep.subr.mxu0 0.0
        %1114 = vmatpush1.msra.mxu0 0.0
        %1115 = vmatprep.subr.mxu0 0.0
        %1116 = vmatpush1.msra.mxu0 0.0
        %1117 = vmatprep.subr.mxu0 0.0
        %1118 = vmatpush1.msra.mxu0 0.0
        %1119 = vmatprep.subr.mxu0 0.0
        %1120 = vmatpush1.msra.mxu0 0.0
        %1121 = vmatprep.subr.mxu0 0.0
        %1122 = vmatpush1.msra.mxu0 0.0
        %1123 = vmatprep.subr.mxu0 0.0
        %1124 = vmatpush1.msra.mxu0 0.0
        %1125 = vmatprep.subr.mxu0 0.0
        %1126 = vmatpush1.msra.mxu0 0.0
        %1127 = vmatprep.subr.mxu0 0.0
        %1128 = vmatpush1.msra.mxu0 0.0
        %1129 = vmatprep.subr.mxu0 0.0
        %1130 = vmatpush1.msra.mxu0 0.0
        %1131 = vmatprep.subr.mxu0 0.0
        %1132 = vmatpush1.msra.mxu0 0.0
        %1133 = vmatprep.subr.mxu0 0.0
        %1134 = vmatpush1.msra.mxu0 0.0
        %1135 = vmatprep.subr.mxu0 0.0
        %1136 = vmatpush1.msra.mxu0 0.0
        %1137 = vmatprep.subr.mxu0 0.0
        %1138 = vmatpush1.msra.mxu0 0.0
        %1139 = vmatprep.subr.mxu0 0.0
        %1140 = vmatpush1.msra.mxu0 0.0
        %1141 = vmatprep.subr.mxu0 0.0
        %1142 = vmatpush1.msra.mxu0 0.0
        %1143 = vmatprep.subr.mxu0 0.0
        %1144 = vmatpush1.msra.mxu0 0.0
        %1145 = vmatprep.subr.mxu0 0.0
        %1146 = vmatpush1.msra.mxu0 0.0
        %1147 = vmatprep.subr.mxu0 0.0
        %1148 = vmatpush1.msra.mxu0 0.0
        %1149 = vmatprep.subr.mxu0 0.0
        %1150 = vmatpush1.msra.mxu0 0.0
        %1151 = vmatprep.subr.mxu0 0.0
        %1152 = vmatpush1.msra.mxu0 0.0
        %1153 = vmatprep.subr.mxu0 0.0
        %1154 = vmatpush1.msra.mxu0 0.0
        %1155 = vmatprep.subr.mxu0 0.0
        %1156 = vmatpush1.msra.mxu0 0.0
        %1157 = vmatprep.subr.mxu0 0.0
        %1158 = vmatpush1.msra.mxu0 0.0
        %1159 = vmatprep.subr.mxu0 0.0
        %1160 = vmatpush1.msra.mxu0 0.0
        %1161 = vmatprep.subr.mxu0 0.0
        %1162 = vmatpush1.msra.mxu0 0.0
        %1163 = vmatprep.mubr.f32.mxu0 0.0
        %1164 = vmatmul.mubr.f32.gmra.mrb[0].mxu0 %v1097
        %v1165 = vpop.f32.mrb[0].mxu0
        %v1166 = vadd.f32 %v1093, %v1165
        %v1167 = vpop.f32.mrb[0].mxu0
        %1168 = vdwg.mxu0
        %1169 = vrot.lane.b32.xlu0 %v661, 112
        %v1170 = vpop.permute.xlu0 %1169
        %1171 = vrot.lane.b32.xlu0 %v816, 112
        %v1172 = vpop.permute.xlu0 %1171
        %1173 = vrot.lane.b32.xlu0 %v795, 88
        %v1174 = vpop.permute.xlu0 %1173
        %1175 = vrot.lane.b32.xlu0 %v796, 88
        %v1176 = vpop.permute.xlu0 %1175
        %v1177 = vsel %vm823, %v1170, 0
        %v1179 = vsel %vm823, %v1172, 0
        %v1181 = vsel %vm823, %v1174, 0
        %v1183 = vsel %vm823, %v1176, 0
        %1185 = vmatprep.subr.mxu0 0.0
        %1186 = vmatpush1.xpose.msra.mxu0 %v1181
        %1187 = vmatprep.subr.mxu0 0.0
        %1188 = vmatpush1.xpose.msra.mxu0 %v1183
        %1189 = vmatprep.subr.mxu0 0.0
        %1190 = vmatpush1.xpose.msra.mxu0 0.0
        %1191 = vmatprep.subr.mxu0 0.0
        %1192 = vmatpush1.xpose.msra.mxu0 0.0
        %1193 = vmatprep.subr.mxu0 0.0
        %1194 = vmatpush1.xpose.msra.mxu0 0.0
        %1195 = vmatprep.subr.mxu0 0.0
        %1196 = vmatpush1.xpose.msra.mxu0 0.0
        %1197 = vmatprep.subr.mxu0 0.0
        %1198 = vmatpush1.xpose.msra.mxu0 0.0
        %1199 = vmatprep.subr.mxu0 0.0
        %1200 = vmatpush1.xpose.msra.mxu0 0.0
        %1201 = vmatprep.subr.mxu0 0.0
        %1202 = vmatpush1.xpose.msra.mxu0 0.0
        %1203 = vmatprep.subr.mxu0 0.0
        %1204 = vmatpush1.xpose.msra.mxu0 0.0
        %1205 = vmatprep.subr.mxu0 0.0
        %1206 = vmatpush1.xpose.msra.mxu0 0.0
        %1207 = vmatprep.subr.mxu0 0.0
        %1208 = vmatpush1.xpose.msra.mxu0 0.0
        %1209 = vmatprep.subr.mxu0 0.0
        %1210 = vmatpush1.xpose.msra.mxu0 0.0
        %1211 = vmatprep.subr.mxu0 0.0
        %1212 = vmatpush1.xpose.msra.mxu0 0.0
        %1213 = vmatprep.subr.mxu0 0.0
        %1214 = vmatpush1.xpose.msra.mxu0 0.0
        %1215 = vmatprep.subr.mxu0 0.0
        %1216 = vmatpush1.xpose.msra.mxu0 0.0
        %1217 = vmatprep.subr.mxu0 0.0
        %1218 = vmatpush1.xpose.msra.mxu0 0.0
        %1219 = vmatprep.subr.mxu0 0.0
        %1220 = vmatpush1.xpose.msra.mxu0 0.0
        %1221 = vmatprep.subr.mxu0 0.0
        %1222 = vmatpush1.xpose.msra.mxu0 0.0
        %1223 = vmatprep.subr.mxu0 0.0
        %1224 = vmatpush1.xpose.msra.mxu0 0.0
        %1225 = vmatprep.subr.mxu0 0.0
        %1226 = vmatpush1.xpose.msra.mxu0 0.0
        %1227 = vmatprep.subr.mxu0 0.0
        %1228 = vmatpush1.xpose.msra.mxu0 0.0
        %1229 = vmatprep.subr.mxu0 0.0
        %1230 = vmatpush1.xpose.msra.mxu0 0.0
        %1231 = vmatprep.subr.mxu0 0.0
        %1232 = vmatpush1.xpose.msra.mxu0 0.0
        %1233 = vmatprep.subr.mxu0 0.0
        %1234 = vmatpush1.xpose.msra.mxu0 0.0
        %1235 = vmatprep.subr.mxu0 0.0
        %1236 = vmatpush1.xpose.msra.mxu0 0.0
        %1237 = vmatprep.subr.mxu0 0.0
        %1238 = vmatpush1.xpose.msra.mxu0 0.0
        %1239 = vmatprep.subr.mxu0 0.0
        %1240 = vmatpush1.xpose.msra.mxu0 0.0
        %1241 = vmatprep.subr.mxu0 0.0
        %1242 = vmatpush1.xpose.msra.mxu0 0.0
        %1243 = vmatprep.subr.mxu0 0.0
        %1244 = vmatpush1.xpose.msra.mxu0 0.0
        %1245 = vmatprep.subr.mxu0 0.0
        %1246 = vmatpush1.xpose.msra.mxu0 0.0
        %1247 = vmatprep.subr.mxu0 0.0
        %1248 = vmatpush1.xpose.msra.mxu0 0.0
        %1249 = vmatprep.mubr.f32.mxu0 0.0
        %1250 = vmatmul.mubr.f32.gmra.mrb[0].mxu0 %v1177
        %v1251 = vpop.f32.mrb[0].mxu0
        %v1252 = vadd.f32 0.0, %v1251
        %v1253 = vpop.f32.mrb[0].mxu0
        %1254 = vmatprep.mubr.f32.mxu0 0.0
        %1255 = vmatmul.mubr.f32.gmra.mrb[0].mxu0 %v1179
        %v1256 = vpop.f32.mrb[0].mxu0
        %v1257 = vadd.f32 0.0, %v1256
        %v1258 = vpop.f32.mrb[0].mxu0
        %1259 = vdwg.mxu0
        %v1260 = vmul.f32 %v1252, 0.35355338
        %v1261 = vmul.f32 %v1257, 0.35355338
        %v1262 = vsel %vm812, %v1260, -1e+30
        %v1263 = vsel %vm813, %v1261, -1e+30
        %v1264 = vsel %vm911, %v1262, -inf
        %1265 = vmax.xlane.f32.xlu0 %v1264
        %v1266 = vpop.xlane.xlu0 %1265
        %v1267 = vsel %vm911, %v1263, -inf
        %1268 = vmax.xlane.f32.xlu0 %v1267
        %v1269 = vpop.xlane.xlu0 %1268
        %v1270 = vsub.f32 %v1262, %v1266
        %v1271 = vsub.f32 %v1263, %v1269
        %v1272 = vmul.f32 %v1270, 1.442695
        %v1273 = vpow.pop %v1272
        %v1274 = vmul.f32 %v1271, 1.442695
        %v1275 = vpow.pop %v1274
        %v1276 = vsel %vm911, %v1273, 0.0
        %1277 = vadd.xlane.f32.xlu0 %v1276
        %v1278 = vpop.xlane.xlu0 %1277
        %v1279 = vsel %vm911, %v1275, 0.0
        %1280 = vadd.xlane.f32.xlu0 %v1279
        %v1281 = vpop.xlane.xlu0 %1280
        %v1282 = vrcp.pop %v1278
        %v1283 = vrcp.pop %v1281
        %v1284 = vmul.f32 %v1273, %v1282
        %v1285 = vmul.f32 %v1275, %v1283
        %1286 = vrot.lane.b32.xlu0 %v755, 72
        %v1287 = vpop.permute.xlu0 %1286
        %1288 = vrot.lane.b32.xlu0 %v760, 72
        %v1289 = vpop.permute.xlu0 %1288
        %v1293 = vsel %vm911, %v1284, 0
        %v1296 = vsel %vm911, %v1285, 0
        %1298 = vmatprep.subr.mxu0 0.0
        %1299 = vmatpush1.msra.mxu0 %v1287
        %1300 = vmatprep.subr.mxu0 0.0
        %1301 = vmatpush1.msra.mxu0 %v1289
        %1302 = vmatprep.subr.mxu0 0.0
        %1303 = vmatpush1.msra.mxu0 0.0
        %1304 = vmatprep.subr.mxu0 0.0
        %1305 = vmatpush1.msra.mxu0 0.0
        %1306 = vmatprep.subr.mxu0 0.0
        %1307 = vmatpush1.msra.mxu0 0.0
        %1308 = vmatprep.subr.mxu0 0.0
        %1309 = vmatpush1.msra.mxu0 0.0
        %1310 = vmatprep.subr.mxu0 0.0
        %1311 = vmatpush1.msra.mxu0 0.0
        %1312 = vmatprep.subr.mxu0 0.0
        %1313 = vmatpush1.msra.mxu0 0.0
        %1314 = vmatprep.subr.mxu0 0.0
        %1315 = vmatpush1.msra.mxu0 0.0
        %1316 = vmatprep.subr.mxu0 0.0
        %1317 = vmatpush1.msra.mxu0 0.0
        %1318 = vmatprep.subr.mxu0 0.0
        %1319 = vmatpush1.msra.mxu0 0.0
        %1320 = vmatprep.subr.mxu0 0.0
        %1321 = vmatpush1.msra.mxu0 0.0
        %1322 = vmatprep.subr.mxu0 0.0
        %1323 = vmatpush1.msra.mxu0 0.0
        %1324 = vmatprep.subr.mxu0 0.0
        %1325 = vmatpush1.msra.mxu0 0.0
        %1326 = vmatprep.subr.mxu0 0.0
        %1327 = vmatpush1.msra.mxu0 0.0
        %1328 = vmatprep.subr.mxu0 0.0
        %1329 = vmatpush1.msra.mxu0 0.0
        %1330 = vmatprep.subr.mxu0 0.0
        %1331 = vmatpush1.msra.mxu0 0.0
        %1332 = vmatprep.subr.mxu0 0.0
        %1333 = vmatpush1.msra.mxu0 0.0
        %1334 = vmatprep.subr.mxu0 0.0
        %1335 = vmatpush1.msra.mxu0 0.0
        %1336 = vmatprep.subr.mxu0 0.0
        %1337 = vmatpush1.msra.mxu0 0.0
        %1338 = vmatprep.subr.mxu0 0.0
        %1339 = vmatpush1.msra.mxu0 0.0
        %1340 = vmatprep.subr.mxu0 0.0
        %1341 = vmatpush1.msra.mxu0 0.0
        %1342 = vmatprep.subr.mxu0 0.0
        %1343 = vmatpush1.msra.mxu0 0.0
        %1344 = vmatprep.subr.mxu0 0.0
        %1345 = vmatpush1.msra.mxu0 0.0
        %1346 = vmatprep.subr.mxu0 0.0
        %1347 = vmatpush1.msra.mxu0 0.0
        %1348 = vmatprep.subr.mxu0 0.0
        %1349 = vmatpush1.msra.mxu0 0.0
        %1350 = vmatprep.subr.mxu0 0.0
        %1351 = vmatpush1.msra.mxu0 0.0
        %1352 = vmatprep.subr.mxu0 0.0
        %1353 = vmatpush1.msra.mxu0 0.0
        %1354 = vmatprep.subr.mxu0 0.0
        %1355 = vmatpush1.msra.mxu0 0.0
        %1356 = vmatprep.subr.mxu0 0.0
        %1357 = vmatpush1.msra.mxu0 0.0
        %1358 = vmatprep.subr.mxu0 0.0
        %1359 = vmatpush1.msra.mxu0 0.0
        %1360 = vmatprep.subr.mxu0 0.0
        %1361 = vmatpush1.msra.mxu0 0.0
        %1362 = vmatprep.mubr.f32.mxu0 0.0
        %1363 = vmatmul.mubr.f32.gmra.mrb[0].mxu0 %v1293
        %v1364 = vpop.f32.mrb[0].mxu0
        %v1365 = vadd.f32 0.0, %v1364
        %v1366 = vpop.f32.mrb[0].mxu0
        %1367 = vmatprep.mubr.f32.mxu0 0.0
        %1368 = vmatmul.mubr.f32.gmra.mrb[0].mxu0 %v1296
        %v1369 = vpop.f32.mrb[0].mxu0
        %v1370 = vadd.f32 0.0, %v1369
        %v1371 = vpop.f32.mrb[0].mxu0
        %1372 = vdwg.mxu0
        %v1374 = vsel %vm823, %v1365, 0
        %1376 = vmatprep.subr.mxu0 0.0
        %1377 = vmatpush1.msra.mxu0 %v799
        %1378 = vmatprep.subr.mxu0 0.0
        %1379 = vmatpush1.msra.mxu0 0.0
        %1380 = vmatprep.subr.mxu0 0.0
        %1381 = vmatpush1.msra.mxu0 0.0
        %1382 = vmatprep.subr.mxu0 0.0
        %1383 = vmatpush1.msra.mxu0 0.0
        %1384 = vmatprep.subr.mxu0 0.0
        %1385 = vmatpush1.msra.mxu0 0.0
        %1386 = vmatprep.subr.mxu0 0.0
        %1387 = vmatpush1.msra.mxu0 0.0
        %1388 = vmatprep.subr.mxu0 0.0
        %1389 = vmatpush1.msra.mxu0 0.0
        %1390 = vmatprep.subr.mxu0 0.0
        %1391 = vmatpush1.msra.mxu0 0.0
        %1392 = vmatprep.subr.mxu0 0.0
        %1393 = vmatpush1.msra.mxu0 0.0
        %1394 = vmatprep.subr.mxu0 0.0
        %1395 = vmatpush1.msra.mxu0 0.0
        %1396 = vmatprep.subr.mxu0 0.0
        %1397 = vmatpush1.msra.mxu0 0.0
        %1398 = vmatprep.subr.mxu0 0.0
        %1399 = vmatpush1.msra.mxu0 0.0
        %1400 = vmatprep.subr.mxu0 0.0
        %1401 = vmatpush1.msra.mxu0 0.0
        %1402 = vmatprep.subr.mxu0 0.0
        %1403 = vmatpush1.msra.mxu0 0.0
        %1404 = vmatprep.subr.mxu0 0.0
        %1405 = vmatpush1.msra.mxu0 0.0
        %1406 = vmatprep.subr.mxu0 0.0
        %1407 = vmatpush1.msra.mxu0 0.0
        %1408 = vmatprep.subr.mxu0 0.0
        %1409 = vmatpush1.msra.mxu0 0.0
        %1410 = vmatprep.subr.mxu0 0.0
        %1411 = vmatpush1.msra.mxu0 0.0
        %1412 = vmatprep.subr.mxu0 0.0
        %1413 = vmatpush1.msra.mxu0 0.0
        %1414 = vmatprep.subr.mxu0 0.0
        %1415 = vmatpush1.msra.mxu0 0.0
        %1416 = vmatprep.subr.mxu0 0.0
        %1417 = vmatpush1.msra.mxu0 0.0
        %1418 = vmatprep.subr.mxu0 0.0
        %1419 = vmatpush1.msra.mxu0 0.0
        %1420 = vmatprep.subr.mxu0 0.0
        %1421 = vmatpush1.msra.mxu0 0.0
        %1422 = vmatprep.subr.mxu0 0.0
        %1423 = vmatpush1.msra.mxu0 0.0
        %1424 = vmatprep.subr.mxu0 0.0
        %1425 = vmatpush1.msra.mxu0 0.0
        %1426 = vmatprep.subr.mxu0 0.0
        %1427 = vmatpush1.msra.mxu0 0.0
        %1428 = vmatprep.subr.mxu0 0.0
        %1429 = vmatpush1.msra.mxu0 0.0
        %1430 = vmatprep.subr.mxu0 0.0
        %1431 = vmatpush1.msra.mxu0 0.0
        %1432 = vmatprep.subr.mxu0 0.0
        %1433 = vmatpush1.msra.mxu0 0.0
        %1434 = vmatprep.subr.mxu0 0.0
        %1435 = vmatpush1.msra.mxu0 0.0
        %1436 = vmatprep.subr.mxu0 0.0
        %1437 = vmatpush1.msra.mxu0 0.0
        %1438 = vmatprep.subr.mxu0 0.0
        %1439 = vmatpush1.msra.mxu0 0.0
        %1440 = vmatprep.mubr.f32.mxu0 0.0
        %1441 = vmatmul.mubr.f32.gmra.mrb[0].mxu0 %v1374
        %v1442 = vpop.f32.mrb[0].mxu0
        %v1443 = vadd.f32 0.0, %v1442
        %v1444 = vpop.f32.mrb[0].mxu0
        %1445 = vdwg.mxu0
        %v1446 = vadd.f32 %v1166, %v1443
        %v1448 = vsel %vm823, %v1370, 0
        %1450 = vmatprep.subr.mxu0 0.0
        %1451 = vmatpush1.msra.mxu0 %v800
        %1452 = vmatprep.subr.mxu0 0.0
        %1453 = vmatpush1.msra.mxu0 0.0
        %1454 = vmatprep.subr.mxu0 0.0
        %1455 = vmatpush1.msra.mxu0 0.0
        %1456 = vmatprep.subr.mxu0 0.0
        %1457 = vmatpush1.msra.mxu0 0.0
        %1458 = vmatprep.subr.mxu0 0.0
        %1459 = vmatpush1.msra.mxu0 0.0
        %1460 = vmatprep.subr.mxu0 0.0
        %1461 = vmatpush1.msra.mxu0 0.0
        %1462 = vmatprep.subr.mxu0 0.0
        %1463 = vmatpush1.msra.mxu0 0.0
        %1464 = vmatprep.subr.mxu0 0.0
        %1465 = vmatpush1.msra.mxu0 0.0
        %1466 = vmatprep.subr.mxu0 0.0
        %1467 = vmatpush1.msra.mxu0 0.0
        %1468 = vmatprep.subr.mxu0 0.0
        %1469 = vmatpush1.msra.mxu0 0.0
        %1470 = vmatprep.subr.mxu0 0.0
        %1471 = vmatpush1.msra.mxu0 0.0
        %1472 = vmatprep.subr.mxu0 0.0
        %1473 = vmatpush1.msra.mxu0 0.0
        %1474 = vmatprep.subr.mxu0 0.0
        %1475 = vmatpush1.msra.mxu0 0.0
        %1476 = vmatprep.subr.mxu0 0.0
        %1477 = vmatpush1.msra.mxu0 0.0
        %1478 = vmatprep.subr.mxu0 0.0
        %1479 = vmatpush1.msra.mxu0 0.0
        %1480 = vmatprep.subr.mxu0 0.0
        %1481 = vmatpush1.msra.mxu0 0.0
        %1482 = vmatprep.subr.mxu0 0.0
        %1483 = vmatpush1.msra.mxu0 0.0
        %1484 = vmatprep.subr.mxu0 0.0
        %1485 = vmatpush1.msra.mxu0 0.0
        %1486 = vmatprep.subr.mxu0 0.0
        %1487 = vmatpush1.msra.mxu0 0.0
        %1488 = vmatprep.subr.mxu0 0.0
        %1489 = vmatpush1.msra.mxu0 0.0
        %1490 = vmatprep.subr.mxu0 0.0
        %1491 = vmatpush1.msra.mxu0 0.0
        %1492 = vmatprep.subr.mxu0 0.0
        %1493 = vmatpush1.msra.mxu0 0.0
        %1494 = vmatprep.subr.mxu0 0.0
        %1495 = vmatpush1.msra.mxu0 0.0
        %1496 = vmatprep.subr.mxu0 0.0
        %1497 = vmatpush1.msra.mxu0 0.0
        %1498 = vmatprep.subr.mxu0 0.0
        %1499 = vmatpush1.msra.mxu0 0.0
        %1500 = vmatprep.subr.mxu0 0.0
        %1501 = vmatpush1.msra.mxu0 0.0
        %1502 = vmatprep.subr.mxu0 0.0
        %1503 = vmatpush1.msra.mxu0 0.0
        %1504 = vmatprep.subr.mxu0 0.0
        %1505 = vmatpush1.msra.mxu0 0.0
        %1506 = vmatprep.subr.mxu0 0.0
        %1507 = vmatpush1.msra.mxu0 0.0
        %1508 = vmatprep.subr.mxu0 0.0
        %1509 = vmatpush1.msra.mxu0 0.0
        %1510 = vmatprep.subr.mxu0 0.0
        %1511 = vmatpush1.msra.mxu0 0.0
        %1512 = vmatprep.subr.mxu0 0.0
        %1513 = vmatpush1.msra.mxu0 0.0
        %1514 = vmatprep.mubr.f32.mxu0 0.0
        %1515 = vmatmul.mubr.f32.gmra.mrb[0].mxu0 %v1448
        %v1516 = vpop.f32.mrb[0].mxu0
        %v1517 = vadd.f32 0.0, %v1516
        %v1518 = vpop.f32.mrb[0].mxu0
        %1519 = vdwg.mxu0
        %v1520 = vadd.f32 %v1446, %v1517
        %v1521 = vadd.f32 %v547, %v1520
        %v1522 = vmul.f32 %v1521, %v1521
        %v1523 = vsel %vm549, %v1522, 0.0
        %1524 = vadd.xlane.f32.xlu0 %v1523
        %v1525 = vpop.xlane.xlu0 %1524
        %v1526 = vmul.f32 %v1525, %v553
        %v1527 = vadd.f32 %v1526, 1e-05
        %v1528 = vrsqrt.pop %v1527
        %v1529 = vmul.f32 %v1521, %v1528
        %v1530 = vld [vmem:[%s3] sm:$0x1]
        %v1532 = vlaneseq
        %v1533 = vshrl.u32 %v1532, 7
        %v1534 = vsub.s32 0, %v1533
        %v1535 = vrot.slane %v1530, %v1534
        %v1537 = vmul.f32 %v1529, %v1535
        %v1538 = vld [vmem:[%s7] sm:$0xff]
        %v1539 = vld [vmem:[%s7 + $0x8] sm:$0xff]
        %v1540 = vld [vmem:[%s7 + $0x10] sm:$0xff]
        %v1541 = vld [vmem:[%s7 + $0x18] sm:$0xff]
        %v1543 = vsel %vm549, %v1537, 0
        %1545 = vmatprep.subr.mxu0 0.0
        %1546 = vmatpush1.msra.mxu0 %v1538
        %1547 = vmatprep.subr.mxu0 0.0
        %1548 = vmatpush1.msra.mxu0 %v1539
        %1549 = vmatprep.subr.mxu0 0.0
        %1550 = vmatpush1.msra.mxu0 %v1540
        %1551 = vmatprep.subr.mxu0 0.0
        %1552 = vmatpush1.msra.mxu0 %v1541
        %1553 = vmatprep.subr.mxu0 0.0
        %1554 = vmatpush1.msra.mxu0 0.0
        %1555 = vmatprep.subr.mxu0 0.0
        %1556 = vmatpush1.msra.mxu0 0.0
        %1557 = vmatprep.subr.mxu0 0.0
        %1558 = vmatpush1.msra.mxu0 0.0
        %1559 = vmatprep.subr.mxu0 0.0
        %1560 = vmatpush1.msra.mxu0 0.0
        %1561 = vmatprep.subr.mxu0 0.0
        %1562 = vmatpush1.msra.mxu0 0.0
        %1563 = vmatprep.subr.mxu0 0.0
        %1564 = vmatpush1.msra.mxu0 0.0
        %1565 = vmatprep.subr.mxu0 0.0
        %1566 = vmatpush1.msra.mxu0 0.0
        %1567 = vmatprep.subr.mxu0 0.0
        %1568 = vmatpush1.msra.mxu0 0.0
        %1569 = vmatprep.subr.mxu0 0.0
        %1570 = vmatpush1.msra.mxu0 0.0
        %1571 = vmatprep.subr.mxu0 0.0
        %1572 = vmatpush1.msra.mxu0 0.0
        %1573 = vmatprep.subr.mxu0 0.0
        %1574 = vmatpush1.msra.mxu0 0.0
        %1575 = vmatprep.subr.mxu0 0.0
        %1576 = vmatpush1.msra.mxu0 0.0
        %1577 = vmatprep.subr.mxu0 0.0
        %1578 = vmatpush1.msra.mxu0 0.0
        %1579 = vmatprep.subr.mxu0 0.0
        %1580 = vmatpush1.msra.mxu0 0.0
        %1581 = vmatprep.subr.mxu0 0.0
        %1582 = vmatpush1.msra.mxu0 0.0
        %1583 = vmatprep.subr.mxu0 0.0
        %1584 = vmatpush1.msra.mxu0 0.0
        %1585 = vmatprep.subr.mxu0 0.0
        %1586 = vmatpush1.msra.mxu0 0.0
        %1587 = vmatprep.subr.mxu0 0.0
        %1588 = vmatpush1.msra.mxu0 0.0
        %1589 = vmatprep.subr.mxu0 0.0
        %1590 = vmatpush1.msra.mxu0 0.0
        %1591 = vmatprep.subr.mxu0 0.0
        %1592 = vmatpush1.msra.mxu0 0.0
        %1593 = vmatprep.subr.mxu0 0.0
        %1594 = vmatpush1.msra.mxu0 0.0
        %1595 = vmatprep.subr.mxu0 0.0
        %1596 = vmatpush1.msra.mxu0 0.0
        %1597 = vmatprep.subr.mxu0 0.0
        %1598 = vmatpush1.msra.mxu0 0.0
        %1599 = vmatprep.subr.mxu0 0.0
        %1600 = vmatpush1.msra.mxu0 0.0
        %1601 = vmatprep.subr.mxu0 0.0
        %1602 = vmatpush1.msra.mxu0 0.0
        %1603 = vmatprep.subr.mxu0 0.0
        %1604 = vmatpush1.msra.mxu0 0.0
        %1605 = vmatprep.subr.mxu0 0.0
        %1606 = vmatpush1.msra.mxu0 0.0
        %1607 = vmatprep.subr.mxu0 0.0
        %1608 = vmatpush1.msra.mxu0 0.0
        %1609 = vmatprep.mubr.f32.mxu0 0.0
        %1610 = vmatmul.mubr.f32.gmra.mrb[0].mxu0 %v1543
        %v1611 = vpop.f32.mrb[0].mxu0
        %v1612 = vadd.f32 0.0, %v1611
        %v1613 = vpop.f32.mrb[0].mxu0
        %1614 = vdwg.mxu0
        %v1615 = vxor.u32 %v1612, 2147483648
        %v1616 = vmul.f32 %v1615, 1.442695
        %v1617 = vpow.pop %v1616
        %v1618 = vadd.f32 %v1617, 1.0
        %v1619 = vrcp.pop %v1618
        %v1620 = vmul.f32 1.0, %v1619
        %v1621 = vmul.f32 %v1612, %v1620
        %1623 = vrot.lane.b32.xlu0 %v1612, 64
        %v1624 = vpop.permute.xlu0 %1623
        %v1626 = vmul.f32 %v1621, %v1624
        %v1627 = vld [vmem:[%s8] sm:$0xff]
        %v1628 = vld [vmem:[%s8 + $0x8] sm:$0xff]
        %v1629 = vld [vmem:[%s8 + $0x10] sm:$0xff]
        %v1630 = vld [vmem:[%s8 + $0x18] sm:$0xff]
        %v1631 = vld [vmem:[%s8 + $0x20] sm:$0xff]
        %v1632 = vld [vmem:[%s8 + $0x28] sm:$0xff]
        %v1633 = vld [vmem:[%s8 + $0x30] sm:$0xff]
        %v1634 = vld [vmem:[%s8 + $0x38] sm:$0xff]
        %vm1635 = vcmask 523264
        %v1637 = vsel %vm1635, %v1626, 0
        %1639 = vmatprep.subr.mxu0 0.0
        %1640 = vmatpush1.msra.mxu0 %v1627
        %1641 = vmatprep.subr.mxu0 0.0
        %1642 = vmatpush1.msra.mxu0 %v1628
        %1643 = vmatprep.subr.mxu0 0.0
        %1644 = vmatpush1.msra.mxu0 %v1629
        %1645 = vmatprep.subr.mxu0 0.0
        %1646 = vmatpush1.msra.mxu0 %v1630
        %1647 = vmatprep.subr.mxu0 0.0
        %1648 = vmatpush1.msra.mxu0 %v1631
        %1649 = vmatprep.subr.mxu0 0.0
        %1650 = vmatpush1.msra.mxu0 %v1632
        %1651 = vmatprep.subr.mxu0 0.0
        %1652 = vmatpush1.msra.mxu0 %v1633
        %1653 = vmatprep.subr.mxu0 0.0
        %1654 = vmatpush1.msra.mxu0 %v1634
        %1655 = vmatprep.subr.mxu0 0.0
        %1656 = vmatpush1.msra.mxu0 0.0
        %1657 = vmatprep.subr.mxu0 0.0
        %1658 = vmatpush1.msra.mxu0 0.0
        %1659 = vmatprep.subr.mxu0 0.0
        %1660 = vmatpush1.msra.mxu0 0.0
        %1661 = vmatprep.subr.mxu0 0.0
        %1662 = vmatpush1.msra.mxu0 0.0
        %1663 = vmatprep.subr.mxu0 0.0
        %1664 = vmatpush1.msra.mxu0 0.0
        %1665 = vmatprep.subr.mxu0 0.0
        %1666 = vmatpush1.msra.mxu0 0.0
        %1667 = vmatprep.subr.mxu0 0.0
        %1668 = vmatpush1.msra.mxu0 0.0
        %1669 = vmatprep.subr.mxu0 0.0
        %1670 = vmatpush1.msra.mxu0 0.0
        %1671 = vmatprep.subr.mxu0 0.0
        %1672 = vmatpush1.msra.mxu0 0.0
        %1673 = vmatprep.subr.mxu0 0.0
        %1674 = vmatpush1.msra.mxu0 0.0
        %1675 = vmatprep.subr.mxu0 0.0
        %1676 = vmatpush1.msra.mxu0 0.0
        %1677 = vmatprep.subr.mxu0 0.0
        %1678 = vmatpush1.msra.mxu0 0.0
        %1679 = vmatprep.subr.mxu0 0.0
        %1680 = vmatpush1.msra.mxu0 0.0
        %1681 = vmatprep.subr.mxu0 0.0
        %1682 = vmatpush1.msra.mxu0 0.0
        %1683 = vmatprep.subr.mxu0 0.0
        %1684 = vmatpush1.msra.mxu0 0.0
        %1685 = vmatprep.subr.mxu0 0.0
        %1686 = vmatpush1.msra.mxu0 0.0
        %1687 = vmatprep.subr.mxu0 0.0
        %1688 = vmatpush1.msra.mxu0 0.0
        %1689 = vmatprep.subr.mxu0 0.0
        %1690 = vmatpush1.msra.mxu0 0.0
        %1691 = vmatprep.subr.mxu0 0.0
        %1692 = vmatpush1.msra.mxu0 0.0
        %1693 = vmatprep.subr.mxu0 0.0
        %1694 = vmatpush1.msra.mxu0 0.0
        %1695 = vmatprep.subr.mxu0 0.0
        %1696 = vmatpush1.msra.mxu0 0.0
        %1697 = vmatprep.subr.mxu0 0.0
        %1698 = vmatpush1.msra.mxu0 0.0
        %1699 = vmatprep.subr.mxu0 0.0
        %1700 = vmatpush1.msra.mxu0 0.0
        %1701 = vmatprep.subr.mxu0 0.0
        %1702 = vmatpush1.msra.mxu0 0.0
        %1703 = vmatprep.mubr.f32.mxu0 0.0
        %1704 = vmatmul.mubr.f32.gmra.mrb[0].mxu0 %v1637
        %v1705 = vpop.f32.mrb[0].mxu0
        %v1706 = vadd.f32 %v1521, %v1705
        %v1707 = vpop.f32.mrb[0].mxu0
        %1708 = vdwg.mxu0
        %1709 = vst.msk [vmem:[%s537] sm:$0xff] %vm549, %v1706
        %s1710 = sand.u32 %s328, 1
        %s1711 = scalar_lea.sflag [#allocation4], %s1710
        %s1712 = sand.u32 %s328, 1
        %s1713 = smul.addr %s1712, 8
        %s1714 = scalar_lea.vmem [#allocation11], %s1713
        // Predicated region
        $region93: #{tpu_custom_call.1} parent=71 // pred_check
          %p1715 = pneg %p338
        $region94: #{tpu_custom_call.1} parent=71 // pred_check_branch
          %1717 = sbr.rel (%p1715) target = $region96
        $region95: #{tpu_custom_call.1} parent=71 // pred_region
          %s1719 = ssub.s32 128, 128
          %1720 = vsyncadd %s1711, %s1719
          %s1721 = smul.addr %s32, 128
          %s1722 = scalar_lea.hbm %s13, %s1721
          %s1724 = sshll.u32 %s1714, 4
          %s1725 = int_to_ptr.vmem [resolvable:$true] %s1724
          %1727 = dma.vmem_to_hbm [thread:$0]  %s1725, 128, %s1722, %s1711
        $region96: #{tpu_custom_call.1} parent=71 // pred_fallthru
          _
      $region72: #{tpu_custom_call.1} parent=5 // pred_fallthru
        _
      %p1728 = scmp.le.s32.totalorder 2, %s27
      // Predicated region
      $region97: #{tpu_custom_call.1} parent=5 // pred_check
        %p1729 = pneg %p1728
      $region98: #{tpu_custom_call.1} parent=5 // pred_check_branch
        %1731 = sbr.rel (%p1729) target = $region100
      $region99: #{tpu_custom_call.1} parent=5 // pred_region
        %s1732 = ssub.s32 %s27, 2
        // Predicated region
        $region101: #{tpu_custom_call.1} parent=99 // pred_check
          %p1733 = pneg %p344
        $region102: #{tpu_custom_call.1} parent=99 // pred_check_branch
          %1735 = sbr.rel (%p1733) target = $region104
        $region103: #{tpu_custom_call.1} parent=99 // pred_region
          %s1736 = sand.u32 %s329, 1
          %s1737 = scalar_lea.sflag [#allocation4], %s1736
          %s1738 = sand.u32 %s329, 1
          %s1739 = smul.addr %s1738, 8
          %s1740 = scalar_lea.vmem [#allocation11], %s1739
          %1741 = dma.done %s1737, 128
        $region104: #{tpu_custom_call.1} parent=99 // pred_fallthru
          _
      $region100: #{tpu_custom_call.1} parent=5 // pred_fallthru
        _
    $region6: #{tpu_custom_call.1} parent=1 // loop_footer
      %s31 = sadd.s32 1, %s27
    $region7: #{tpu_custom_call.1} parent=1 // loop_footer_branch
      %26 = sbr.rel target = $region3
    $region8: #{tpu_custom_call.1} parent=1 // loop_exit
      _
    %1742 = vsyncpa [#allocation3], 1
    %s1743 = scalar_lea.sflag [#allocation3], 1
    %1744 = vsyncpa %s1743, 1
    %1745 = vsyncpa [#allocation6], 1
    %1746 = vsyncpa [#allocation9], 1
    %1747 = vsyncpa [#allocation4], 1
    %s1748 = scalar_lea.sflag [#allocation4], 1
    %1749 = vsyncpa %s1748, 1

</llo_original>
